<compile_context>
chip_gen: v5e
topology: v5e:2x2
jax: 0.10.0
libtpu: 0.0.40
codegen_flags: <defaults>
</compile_context>

<pallas_src>
import jax
import jax.numpy as jnp
import numpy as np
from jax.experimental import pallas as pl
from jax.experimental.pallas import tpu as pltpu


# ---------------------------------------------------------------------------
# Fused kernel: MLP -> doc/vocab softmaxes -> marginalized gen loss + KL loss.
# Grid axis 0 tiles the label length L (reduction axis -> "arbitrary").
# ---------------------------------------------------------------------------
def _make_fused_kernel(pad_id, inv_label_len, vocab_dtype):
    def kernel(lbl_ref, h_ref, logits_ref, w1_ref, b1_ref, w2_ref, b2_ref,
               w3_ref, b3_ref, docsc_ref, gen_ref, cons_ref, gsum_sc):
        n, tl, v = logits_ref.shape
        h = h_ref.shape[-1]
        step = pl.program_id(0)

        @pl.when(step == 0)
        def _init():
            gen_ref[...] = jnp.zeros_like(gen_ref)
            cons_ref[...] = jnp.zeros_like(cons_ref)
            gsum_sc[...] = jnp.zeros_like(gsum_sc)

        # ---- label mask built in-kernel from int32 ids (no one-hot stream) --
        lbl = lbl_ref[...]                                     # [TL, 1] int32
        col = jax.lax.broadcasted_iota(jnp.int32, (tl, v), 1)  # [TL, V]
        label_mask = col == lbl                                # [TL, V] bool
        valid = (lbl != pad_id).astype(jnp.float32)            # [TL, 1]

        # ---- dynamic_score_projection, flattened over (doc, token) rows -----
        # bf16 MXU inputs with f32 accumulation; one matmul per layer.
        x = h_ref[...].reshape(n * tl, h)                      # [N*TL, H] bf16
        x1 = jnp.maximum(
            jnp.dot(x, w1_ref[...], preferred_element_type=jnp.float32)
            + b1_ref[...], 0.0)
        x2 = jnp.maximum(
            jnp.dot(x1.astype(jnp.bfloat16), w2_ref[...],
                    preferred_element_type=jnp.float32) + b2_ref[...], 0.0)
        # Linear(H, 1): elementwise mul + lane reduction, bias from SMEM.
        ds_flat = (jnp.sum(x2 * w3_ref[...], axis=-1, keepdims=True)
                   + b3_ref[0])                                # [N*TL, 1] f32

        # ---- per-doc vocab pass: one [TL, V] slab live at a time ------------
        # c_d = log p(label_t | doc d) = gathered_logit - logsumexp_V(logits)
        ds_list, c_list = [], []
        for d in range(n):
            lg = logits_ref[d].astype(vocab_dtype)             # [TL, V]
            m_v = jnp.max(lg, axis=-1, keepdims=True)
            es = jnp.sum(jnp.exp(lg - m_v), axis=-1, keepdims=True,
                         dtype=jnp.float32)                    # f32 accumulate
            lse = m_v.astype(jnp.float32) + jnp.log(es)        # [TL, 1]
            gath = jnp.sum(jnp.where(label_mask, lg, jnp.zeros_like(lg)),
                           axis=-1, keepdims=True, dtype=jnp.float32)
            c_list.append(gath - lse)                          # [TL, 1]
            ds_list.append(ds_flat[d * tl:(d + 1) * tl])       # [TL, 1]

        # ---- log-softmax over docs of the dynamic scores (N small, unrolled)
        m_d = ds_list[0]
        for d in range(1, n):
            m_d = jnp.maximum(m_d, ds_list[d])
        sum_exp_ds = jnp.exp(ds_list[0] - m_d)
        for d in range(1, n):
            sum_exp_ds = sum_exp_ds + jnp.exp(ds_list[d] - m_d)
        lse_ds = m_d + jnp.log(sum_exp_ds)                     # [TL, 1]
        doc_lp = [ds_list[d] - lse_ds for d in range(n)]       # [TL, 1] each

        # ---- marginal token log-prob: logsumexp over docs of (c + doc_lp) ---
        z = [c_list[d] + doc_lp[d] for d in range(n)]
        m_z = z[0]
        for d in range(1, n):
            m_z = jnp.maximum(m_z, z[d])
        s_z = jnp.exp(z[0] - m_z)
        for d in range(1, n):
            s_z = s_z + jnp.exp(z[d] - m_z)
        tok_lp = m_z + jnp.log(s_z)                            # [TL, 1]

        # valid mask applied AFTER tok_lp (matches reference masked_fill order)
        gen_ref[...] += -jnp.sum(tok_lp * valid, axis=0, keepdims=True)

        # accumulate doc-posterior mass: g_probs = mean_L softmax_docs(ds)
        for d in range(n):
            gsum_sc[d] = gsum_sc[d] + jnp.sum(jnp.exp(doc_lp[d]),
                                              axis=0, keepdims=True)

        @pl.when(step == pl.num_programs(0) - 1)
        def _finalize():
            g = jnp.maximum(gsum_sc[...] * inv_label_len, 1e-30)  # [N,1,1]
            dsr = docsc_ref[...]                                  # [N,1,1]
            m_r = jnp.max(dsr, axis=0, keepdims=True)
            er = jnp.exp(dsr - m_r)
            r = er / jnp.sum(er, axis=0, keepdims=True)           # exact softmax
            r = jnp.maximum(r, 1e-5)
            r = r / jnp.sum(r, axis=0, keepdims=True)             # Categorical renorm
            kl = g * (jnp.log(g) - jnp.log(r))
            cons_ref[...] = jnp.sum(kl, axis=0)                   # [1,1]

    return kernel


# ---------------------------------------------------------------------------
# Wrapper glue (plain JAX): label shift, bf16 casts, tile selection, pallas_call
# ---------------------------------------------------------------------------
def _default_vocab_dtype():
    """bf16 vocab exp on v6e/v7x (bf16 EUP); f32 on v5e and older."""
    try:
        kind = jax.devices()[0].device_kind.lower()
    except Exception:
        return jnp.float32
    if any(t in kind for t in ("v2", "v3", "v4", "v5")):
        return jnp.float32
    return jnp.bfloat16


def _choose_tile_l(n, l, v, h, budget_bytes=12 << 20):
    """Largest L tile whose pipeline buffers fit a conservative VMEM budget."""
    # 2x bf16 logits buffers + 2x bf16 hidden buffers + one live [TL,V] temp.
    per_tok = 2 * n * v * 2 + 2 * n * h * 2 + v * 4 + 512
    cap = max(1, budget_bytes // per_tok)
    if l <= cap:
        return l          # single grid step (avoids per-step overhead)
    best = l
    for t in range(8, min(cap, l) + 1, 8):
        if l % t == 0:
            best = t
    return best


def generator_forward(hidden_states, logits, doc_scores, labels, params,
                      pad_id, tile_l=None, vocab_compute_dtype=None,
                      vmem_limit_bytes=None):
    n, l, h = hidden_states.shape
    v = logits.shape[-1]
    w1, b1, w2, b2, w3_row, b3 = params

    if vocab_compute_dtype is None:
        vocab_compute_dtype = _default_vocab_dtype()
    if tile_l is None:
        tile_l = _choose_tile_l(n, l, v, h)
    assert l % tile_l == 0, "label length must be a multiple of the L tile"
    num_tiles = l // tile_l

    hidden_bf16 = hidden_states.astype(jnp.bfloat16)
    logits_bf16 = logits.astype(jnp.bfloat16)      # halve the [N,L,V] HBM stream
    w1b = w1.astype(jnp.bfloat16)
    w2b = w2.astype(jnp.bfloat16)

    labels_shift = jnp.concatenate(
        [labels[1:], jnp.full((1,), pad_id, labels.dtype)])
    labels_col = labels_shift.astype(jnp.int32).reshape(l, 1)   # [L, 1] int32

    kernel = _make_fused_kernel(pad_id=pad_id, inv_label_len=1.0 / l,
                                vocab_dtype=vocab_compute_dtype)

    # Static operands live whole-array in VMEM (outside the L-tile pipeline).
    vmem_full = pl.BlockSpec(memory_space=pltpu.MemorySpace.VMEM)

    gen, cons = pl.pallas_call(
        kernel,
        out_shape=(jax.ShapeDtypeStruct((1, 1), jnp.float32),
                   jax.ShapeDtypeStruct((1, 1), jnp.float32)),
        grid=(num_tiles,),
        in_specs=[
            pl.BlockSpec((tile_l, 1), lambda i: (i, 0)),        # labels (int32)
            pl.BlockSpec((n, tile_l, h), lambda i: (0, i, 0)),  # hidden (bf16)
            pl.BlockSpec((n, tile_l, v), lambda i: (0, i, 0)),  # logits (bf16)
            vmem_full,                                          # w1 (bf16)
            vmem_full,                                          # b1
            vmem_full,                                          # w2 (bf16)
            vmem_full,                                          # b2
            vmem_full,                                          # w3 row
            pl.BlockSpec(memory_space=pltpu.MemorySpace.SMEM),  # b3 scalar
            vmem_full,                                          # doc_scores
        ],
        out_specs=(pl.BlockSpec((1, 1), lambda i: (0, 0)),
                   pl.BlockSpec((1, 1), lambda i: (0, 0))),
        scratch_shapes=[pltpu.VMEM((n, 1, 1), jnp.float32)],    # doc-mass accum
        compiler_params=pltpu.CompilerParams(
            # L tiles accumulate into the same output block -> reduction axis.
            dimension_semantics=("arbitrary",),
            vmem_limit_bytes=vmem_limit_bytes),
    )(labels_col, hidden_bf16, logits_bf16, w1b, b1, w2b, b2, w3_row, b3,
      doc_scores.astype(jnp.float32).reshape(n, 1, 1))
    return gen[0, 0], cons[0, 0]


# ---------------------------------------------------------------------------
# Pure-JAX reference (mirrors the PyTorch semantics; same bf16 streaming/MXU)
# ---------------------------------------------------------------------------
def reference_forward(hidden_states, logits, doc_scores, labels, params, pad_id):
    n, l, h = hidden_states.shape
    w1, b1, w2, b2, w3_row, b3 = params
    x = hidden_states.astype(jnp.bfloat16).reshape(n * l, h)
    x = jax.nn.relu(jnp.dot(x, w1.astype(jnp.bfloat16),
                            preferred_element_type=jnp.float32) + b1)
    x = jax.nn.relu(jnp.dot(x.astype(jnp.bfloat16), w2.astype(jnp.bfloat16),
                            preferred_element_type=jnp.float32) + b2)
    ds = (jnp.sum(x * w3_row, axis=-1) + b3[0]).reshape(n, l)

    labels_shift = jnp.concatenate(
        [labels[1:], jnp.full((1,), pad_id, labels.dtype)])
    logits_f = logits.astype(jnp.bfloat16).astype(jnp.float32)  # mirror bf16 stream
    seq_lp = jax.nn.log_softmax(logits_f, axis=-1)
    doc_lp = jax.nn.log_softmax(ds, axis=0)
    logprobs = jax.scipy.special.logsumexp(seq_lp + doc_lp[:, :, None], axis=0)
    gathered = jnp.take_along_axis(logprobs, labels_shift[:, None], axis=-1)
    gathered = jnp.where(labels_shift[:, None] == pad_id, 0.0, gathered)
    gen = -jnp.sum(gathered)

    g = jax.nn.softmax(ds, axis=0).mean(axis=1)
    r = jnp.clip(jax.nn.softmax(doc_scores, axis=0), 1e-5, None)
    r = r / r.sum()
    cons = jnp.sum(g * (jnp.log(g) - jnp.log(r)))
    return gen, cons


if __name__ == "__main__":
    N, L, H, V = 4, 32, 128, 256          # n_docs, label_len, generator_dim, vocab
    PAD_ID = 0

    key = jax.random.PRNGKey(0)
    ks = jax.random.split(key, 10)

    # synthetic stand-ins for the CPM1 backbone outputs (label-segment slice)
    hidden_states = jax.random.normal(ks[0], (N, L, H), jnp.float32)
    logits = jax.random.normal(ks[1], (N, L, V), jnp.float32)
    doc_scores = jax.random.normal(ks[2], (N,), jnp.float32)
    labels = jax.random.randint(ks[3], (L,), 0, V).astype(jnp.int32)

    # deterministic MLP parameters (shapes from dynamic_score_projection)
    s = float(1.0 / np.sqrt(H))
    w1 = jax.random.uniform(ks[4], (H, H), jnp.float32, -s, s)
    b1 = jax.random.uniform(ks[5], (1, H), jnp.float32, -s, s)
    w2 = jax.random.uniform(ks[6], (H, H), jnp.float32, -s, s)
    b2 = jax.random.uniform(ks[7], (1, H), jnp.float32, -s, s)
    w3_row = jax.random.uniform(ks[8], (1, H), jnp.float32, -s, s)  # Linear(H,1) weight
    b3 = jax.random.uniform(ks[9], (1,), jnp.float32, -s, s)        # Linear(H,1) bias
    params = (w1, b1, w2, b2, w3_row, b3)

    ref_gen, ref_cons = reference_forward(
        hidden_states, logits, doc_scores, labels, params, PAD_ID)

    # default path: auto tile (single grid step at these demo shapes)
    gen_loss, cons_loss = generator_forward(
        hidden_states, logits, doc_scores, labels, params, PAD_ID)
    jax.block_until_ready((gen_loss, cons_loss))

    # tolerances account for bf16 logits streaming / bf16 MXU / bf16 vocab exp
    np.testing.assert_allclose(np.asarray(gen_loss), np.asarray(ref_gen),
                               rtol=1e-2, atol=5e-2)
    np.testing.assert_allclose(np.asarray(cons_loss), np.asarray(ref_cons),
                               rtol=1e-2, atol=5e-3)

    # also exercise the multi-step L-tiled reduction path
    gen_t, cons_t = generator_forward(
        hidden_states, logits, doc_scores, labels, params, PAD_ID, tile_l=16)
    jax.block_until_ready((gen_t, cons_t))
    np.testing.assert_allclose(np.asarray(gen_t), np.asarray(ref_gen),
                               rtol=1e-2, atol=5e-2)
    np.testing.assert_allclose(np.asarray(cons_t), np.asarray(ref_cons),
                               rtol=1e-2, atol=5e-3)

    print("KERNEL_OK")
</pallas_src>

<mosaic_0001>
module attributes {stable_mosaic.version = 11 : i64} {
  func.func @kernel(%arg0: i32, %arg1: memref<32x1xi32, #tpu.memory_space<vmem>>, %arg2: memref<4x32x128xbf16, #tpu.memory_space<vmem>>, %arg3: memref<4x32x256xbf16, #tpu.memory_space<vmem>>, %arg4: memref<128x128xbf16, #tpu.memory_space<vmem>>, %arg5: memref<1x128xf32, #tpu.memory_space<vmem>>, %arg6: memref<128x128xbf16, #tpu.memory_space<vmem>>, %arg7: memref<1x128xf32, #tpu.memory_space<vmem>>, %arg8: memref<1x128xf32, #tpu.memory_space<vmem>>, %arg9: memref<1xf32, #tpu.memory_space<smem>>, %arg10: memref<4x1x1xf32, #tpu.memory_space<vmem>>, %arg11: memref<1x1xf32, #tpu.memory_space<vmem>>, %arg12: memref<1x1xf32, #tpu.memory_space<vmem>>, %arg13: memref<4x1x1xf32, #tpu.memory_space<vmem>>) attributes {dimension_semantics = [#tpu.dimension_semantics<arbitrary>], iteration_bounds = array<i64: 1>, scalar_prefetch = 0 : i64, scratch_operands = 1 : i64, tpu.core_type = #tpu.core_type<tc>, window_params = [{transform_indices = @transform_0, window_bounds = array<i64: 32, 1>}, {transform_indices = @transform_1, window_bounds = array<i64: 4, 32, 128>}, {transform_indices = @transform_2, window_bounds = array<i64: 4, 32, 256>}, {pipeline_mode = #tpu.pipeline_mode<synchronous>, transform_indices = @transform_3, window_bounds = array<i64: 128, 128>}, {pipeline_mode = #tpu.pipeline_mode<synchronous>, transform_indices = @transform_4, window_bounds = array<i64: 1, 128>}, {pipeline_mode = #tpu.pipeline_mode<synchronous>, transform_indices = @transform_5, window_bounds = array<i64: 128, 128>}, {pipeline_mode = #tpu.pipeline_mode<synchronous>, transform_indices = @transform_6, window_bounds = array<i64: 1, 128>}, {pipeline_mode = #tpu.pipeline_mode<synchronous>, transform_indices = @transform_7, window_bounds = array<i64: 1, 128>}, {transform_indices = @transform_8, window_bounds = array<i64: 1>}, {pipeline_mode = #tpu.pipeline_mode<synchronous>, transform_indices = @transform_9, window_bounds = array<i64: 4, 1, 1>}, {pipeline_mode = #tpu.pipeline_mode<synchronous>, transform_indices = @transform_10, window_bounds = array<i64: 1, 1>}, {pipeline_mode = #tpu.pipeline_mode<synchronous>, transform_indices = @transform_11, window_bounds = array<i64: 1, 1>}]} {
    %c0_i32 = arith.constant 0 : i32
    %0 = arith.cmpi eq, %arg0, %c0_i32 : i32
    %1 = arith.extui %0 : i1 to i32
    %c0_i32_0 = arith.constant 0 : i32
    %2 = arith.cmpi ne, %1, %c0_i32_0 : i32
    scf.if %2 {
      %cst_82 = arith.constant 0.000000e+00 : f32
      %203 = vector.broadcast %cst_82 : f32 to vector<1x1xf32>
      %c0_83 = arith.constant 0 : index
      %c0_84 = arith.constant 0 : index
      %204 = vector.load %arg11[%c0_83, %c0_84] : memref<1x1xf32, #tpu.memory_space<vmem>>, vector<1x1xf32>
      tpu.vector_store %arg11[%c0_83, %c0_84], %203 {strides = array<i32>} : memref<1x1xf32, #tpu.memory_space<vmem>>, vector<1x1xf32>,
      %cst_85 = arith.constant 0.000000e+00 : f32
      %205 = vector.broadcast %cst_85 : f32 to vector<1x1xf32>
      %c0_86 = arith.constant 0 : index
      %c0_87 = arith.constant 0 : index
      %206 = vector.load %arg12[%c0_86, %c0_87] : memref<1x1xf32, #tpu.memory_space<vmem>>, vector<1x1xf32>
      tpu.vector_store %arg12[%c0_86, %c0_87], %205 {strides = array<i32>} : memref<1x1xf32, #tpu.memory_space<vmem>>, vector<1x1xf32>,
      %cst_88 = arith.constant 0.000000e+00 : f32
      %207 = vector.broadcast %cst_88 : f32 to vector<4x1x1xf32>
      %c0_89 = arith.constant 0 : index
      %c0_90 = arith.constant 0 : index
      %c0_91 = arith.constant 0 : index
      %208 = vector.load %arg13[%c0_89, %c0_90, %c0_91] : memref<4x1x1xf32, #tpu.memory_space<vmem>>, vector<4x1x1xf32>
      tpu.vector_store %arg13[%c0_89, %c0_90, %c0_91], %207 {strides = array<i32>} : memref<4x1x1xf32, #tpu.memory_space<vmem>>, vector<4x1x1xf32>,
    } else {
    }
    %c0 = arith.constant 0 : index
    %c0_1 = arith.constant 0 : index
    %3 = vector.load %arg1[%c0, %c0_1] : memref<32x1xi32, #tpu.memory_space<vmem>>, vector<32x1xi32>
    %4 = tpu.iota {dimensions = array<i32: 1>} : vector<32x256xi32>
    %5 = vector.broadcast %3 : vector<32x1xi32> to vector<32x256xi32>
    %6 = arith.cmpi eq, %4, %5 : vector<32x256xi32>
    %c0_i32_2 = arith.constant 0 : i32
    %7 = vector.broadcast %c0_i32_2 : i32 to vector<32x1xi32>
    %8 = arith.cmpi ne, %3, %7 : vector<32x1xi32>
    %9 = arith.extui %8 : vector<32x1xi1> to vector<32x1xi32>
    %10 = arith.sitofp %9 : vector<32x1xi32> to vector<32x1xf32>
    %c0_3 = arith.constant 0 : index
    %c0_4 = arith.constant 0 : index
    %c0_5 = arith.constant 0 : index
    %11 = vector.load %arg2[%c0_3, %c0_4, %c0_5] : memref<4x32x128xbf16, #tpu.memory_space<vmem>>, vector<4x32x128xbf16>
    %12 = vector.shape_cast %11 : vector<4x32x128xbf16> to vector<128x128xbf16>
    %c0_6 = arith.constant 0 : index
    %c0_7 = arith.constant 0 : index
    %13 = vector.load %arg4[%c0_6, %c0_7] : memref<128x128xbf16, #tpu.memory_space<vmem>>, vector<128x128xbf16>
    %cst = arith.constant dense<0.000000e+00> : vector<128x128xf32>
    %14 = tpu.matmul %12, %13, %cst {dimension_numbers = #tpu.dot_dimension_numbers<[1], [0], [0], [1], [0, 0, 1, 1], [], []>} : vector<128x128xbf16>, vector<128x128xbf16>, vector<128x128xf32> -> vector<128x128xf32>
    %c0_8 = arith.constant 0 : index
    %c0_9 = arith.constant 0 : index
    %15 = vector.load %arg5[%c0_8, %c0_9] : memref<1x128xf32, #tpu.memory_space<vmem>>, vector<1x128xf32>
    %16 = vector.broadcast %15 : vector<1x128xf32> to vector<128x128xf32>
    %17 = arith.addf %14, %16 : vector<128x128xf32>
    %cst_10 = arith.constant 0.000000e+00 : f32
    %18 = vector.broadcast %cst_10 : f32 to vector<128x128xf32>
    %19 = arith.maximumf %17, %18 : vector<128x128xf32>
    %20 = arith.truncf %19 : vector<128x128xf32> to vector<128x128xbf16>
    %c0_11 = arith.constant 0 : index
    %c0_12 = arith.constant 0 : index
    %21 = vector.load %arg6[%c0_11, %c0_12] : memref<128x128xbf16, #tpu.memory_space<vmem>>, vector<128x128xbf16>
    %cst_13 = arith.constant dense<0.000000e+00> : vector<128x128xf32>
    %22 = tpu.matmul %20, %21, %cst_13 {dimension_numbers = #tpu.dot_dimension_numbers<[1], [0], [0], [1], [0, 0, 1, 1], [], []>} : vector<128x128xbf16>, vector<128x128xbf16>, vector<128x128xf32> -> vector<128x128xf32>
    %c0_14 = arith.constant 0 : index
    %c0_15 = arith.constant 0 : index
    %23 = vector.load %arg7[%c0_14, %c0_15] : memref<1x128xf32, #tpu.memory_space<vmem>>, vector<1x128xf32>
    %24 = vector.broadcast %23 : vector<1x128xf32> to vector<128x128xf32>
    %25 = arith.addf %22, %24 : vector<128x128xf32>
    %cst_16 = arith.constant 0.000000e+00 : f32
    %26 = vector.broadcast %cst_16 : f32 to vector<128x128xf32>
    %27 = arith.maximumf %25, %26 : vector<128x128xf32>
    %c0_17 = arith.constant 0 : index
    %c0_18 = arith.constant 0 : index
    %28 = vector.load %arg8[%c0_17, %c0_18] : memref<1x128xf32, #tpu.memory_space<vmem>>, vector<1x128xf32>
    %29 = vector.broadcast %28 : vector<1x128xf32> to vector<128x128xf32>
    %30 = arith.mulf %27, %29 : vector<128x128xf32>
    %cst_19 = arith.constant dense<0.000000e+00> : vector<128xf32>
    %31 = vector.multi_reduction <add>, %30, %cst_19 [1] : vector<128x128xf32> to vector<128xf32>
    %32 = vector.shape_cast %31 : vector<128xf32> to vector<128x1xf32>
    %c0_20 = arith.constant 0 : index
    %33 = memref.load %arg9[%c0_20] : memref<1xf32, #tpu.memory_space<smem>>
    %34 = vector.broadcast %33 : f32 to vector<128x1xf32>
    %35 = arith.addf %32, %34 : vector<128x1xf32>
    %c0_21 = arith.constant 0 : index
    %c0_22 = arith.constant 0 : index
    %c0_23 = arith.constant 0 : index
    %36 = vector.load %arg3[%c0_21, %c0_22, %c0_23] : memref<4x32x256xbf16, #tpu.memory_space<vmem>>, vector<1x32x256xbf16>
    %37 = vector.shape_cast %36 : vector<1x32x256xbf16> to vector<32x256xbf16>
    %cst_24 = arith.constant dense<0xFF80> : vector<32xbf16>
    %38 = vector.multi_reduction <maximumf>, %37, %cst_24 [1] : vector<32x256xbf16> to vector<32xbf16>
    %39 = vector.shape_cast %38 : vector<32xbf16> to vector<32x1xbf16>
    %40 = vector.broadcast %39 : vector<32x1xbf16> to vector<32x256xbf16>
    %41 = arith.subf %37, %40 : vector<32x256xbf16>
    %42 = math.exp %41 : vector<32x256xbf16>
    %43 = arith.extf %42 : vector<32x256xbf16> to vector<32x256xf32>
    %cst_25 = arith.constant dense<0.000000e+00> : vector<32xf32>
    %44 = vector.multi_reduction <add>, %43, %cst_25 [1] : vector<32x256xf32> to vector<32xf32>
    %45 = vector.shape_cast %44 : vector<32xf32> to vector<32x1xf32>
    %46 = arith.extf %39 : vector<32x1xbf16> to vector<32x1xf32>
    %47 = math.log %45 : vector<32x1xf32>
    %48 = arith.addf %46, %47 : vector<32x1xf32>
    %cst_26 = arith.constant 0.000000e+00 : bf16
    %49 = vector.broadcast %cst_26 : bf16 to vector<32x256xbf16>
    %50 = arith.select %6, %37, %49 : vector<32x256xi1>, vector<32x256xbf16>
    %51 = arith.extf %50 : vector<32x256xbf16> to vector<32x256xf32>
    %cst_27 = arith.constant dense<0.000000e+00> : vector<32xf32>
    %52 = vector.multi_reduction <add>, %51, %cst_27 [1] : vector<32x256xf32> to vector<32xf32>
    %53 = vector.shape_cast %52 : vector<32xf32> to vector<32x1xf32>
    %54 = arith.subf %53, %48 : vector<32x1xf32>
    %55 = vector.extract_strided_slice %35 {offsets = [0, 0], sizes = [32, 1], strides = [1, 1]} : vector<128x1xf32> to vector<32x1xf32>
    %c1 = arith.constant 1 : index
    %c0_28 = arith.constant 0 : index
    %c0_29 = arith.constant 0 : index
    %56 = vector.load %arg3[%c1, %c0_28, %c0_29] : memref<4x32x256xbf16, #tpu.memory_space<vmem>>, vector<1x32x256xbf16>
    %57 = vector.shape_cast %56 : vector<1x32x256xbf16> to vector<32x256xbf16>
    %cst_30 = arith.constant dense<0xFF80> : vector<32xbf16>
    %58 = vector.multi_reduction <maximumf>, %57, %cst_30 [1] : vector<32x256xbf16> to vector<32xbf16>
    %59 = vector.shape_cast %58 : vector<32xbf16> to vector<32x1xbf16>
    %60 = vector.broadcast %59 : vector<32x1xbf16> to vector<32x256xbf16>
    %61 = arith.subf %57, %60 : vector<32x256xbf16>
    %62 = math.exp %61 : vector<32x256xbf16>
    %63 = arith.extf %62 : vector<32x256xbf16> to vector<32x256xf32>
    %cst_31 = arith.constant dense<0.000000e+00> : vector<32xf32>
    %64 = vector.multi_reduction <add>, %63, %cst_31 [1] : vector<32x256xf32> to vector<32xf32>
    %65 = vector.shape_cast %64 : vector<32xf32> to vector<32x1xf32>
    %66 = arith.extf %59 : vector<32x1xbf16> to vector<32x1xf32>
    %67 = math.log %65 : vector<32x1xf32>
    %68 = arith.addf %66, %67 : vector<32x1xf32>
    %cst_32 = arith.constant 0.000000e+00 : bf16
    %69 = vector.broadcast %cst_32 : bf16 to vector<32x256xbf16>
    %70 = arith.select %6, %57, %69 : vector<32x256xi1>, vector<32x256xbf16>
    %71 = arith.extf %70 : vector<32x256xbf16> to vector<32x256xf32>
    %cst_33 = arith.constant dense<0.000000e+00> : vector<32xf32>
    %72 = vector.multi_reduction <add>, %71, %cst_33 [1] : vector<32x256xf32> to vector<32xf32>
    %73 = vector.shape_cast %72 : vector<32xf32> to vector<32x1xf32>
    %74 = arith.subf %73, %68 : vector<32x1xf32>
    %75 = vector.extract_strided_slice %35 {offsets = [32, 0], sizes = [32, 1], strides = [1, 1]} : vector<128x1xf32> to vector<32x1xf32>
    %c2 = arith.constant 2 : index
    %c0_34 = arith.constant 0 : index
    %c0_35 = arith.constant 0 : index
    %76 = vector.load %arg3[%c2, %c0_34, %c0_35] : memref<4x32x256xbf16, #tpu.memory_space<vmem>>, vector<1x32x256xbf16>
    %77 = vector.shape_cast %76 : vector<1x32x256xbf16> to vector<32x256xbf16>
    %cst_36 = arith.constant dense<0xFF80> : vector<32xbf16>
    %78 = vector.multi_reduction <maximumf>, %77, %cst_36 [1] : vector<32x256xbf16> to vector<32xbf16>
    %79 = vector.shape_cast %78 : vector<32xbf16> to vector<32x1xbf16>
    %80 = vector.broadcast %79 : vector<32x1xbf16> to vector<32x256xbf16>
    %81 = arith.subf %77, %80 : vector<32x256xbf16>
    %82 = math.exp %81 : vector<32x256xbf16>
    %83 = arith.extf %82 : vector<32x256xbf16> to vector<32x256xf32>
    %cst_37 = arith.constant dense<0.000000e+00> : vector<32xf32>
    %84 = vector.multi_reduction <add>, %83, %cst_37 [1] : vector<32x256xf32> to vector<32xf32>
    %85 = vector.shape_cast %84 : vector<32xf32> to vector<32x1xf32>
    %86 = arith.extf %79 : vector<32x1xbf16> to vector<32x1xf32>
    %87 = math.log %85 : vector<32x1xf32>
    %88 = arith.addf %86, %87 : vector<32x1xf32>
    %cst_38 = arith.constant 0.000000e+00 : bf16
    %89 = vector.broadcast %cst_38 : bf16 to vector<32x256xbf16>
    %90 = arith.select %6, %77, %89 : vector<32x256xi1>, vector<32x256xbf16>
    %91 = arith.extf %90 : vector<32x256xbf16> to vector<32x256xf32>
    %cst_39 = arith.constant dense<0.000000e+00> : vector<32xf32>
    %92 = vector.multi_reduction <add>, %91, %cst_39 [1] : vector<32x256xf32> to vector<32xf32>
    %93 = vector.shape_cast %92 : vector<32xf32> to vector<32x1xf32>
    %94 = arith.subf %93, %88 : vector<32x1xf32>
    %95 = vector.extract_strided_slice %35 {offsets = [64, 0], sizes = [32, 1], strides = [1, 1]} : vector<128x1xf32> to vector<32x1xf32>
    %c3 = arith.constant 3 : index
    %c0_40 = arith.constant 0 : index
    %c0_41 = arith.constant 0 : index
    %96 = vector.load %arg3[%c3, %c0_40, %c0_41] : memref<4x32x256xbf16, #tpu.memory_space<vmem>>, vector<1x32x256xbf16>
    %97 = vector.shape_cast %96 : vector<1x32x256xbf16> to vector<32x256xbf16>
    %cst_42 = arith.constant dense<0xFF80> : vector<32xbf16>
    %98 = vector.multi_reduction <maximumf>, %97, %cst_42 [1] : vector<32x256xbf16> to vector<32xbf16>
    %99 = vector.shape_cast %98 : vector<32xbf16> to vector<32x1xbf16>
    %100 = vector.broadcast %99 : vector<32x1xbf16> to vector<32x256xbf16>
    %101 = arith.subf %97, %100 : vector<32x256xbf16>
    %102 = math.exp %101 : vector<32x256xbf16>
    %103 = arith.extf %102 : vector<32x256xbf16> to vector<32x256xf32>
    %cst_43 = arith.constant dense<0.000000e+00> : vector<32xf32>
    %104 = vector.multi_reduction <add>, %103, %cst_43 [1] : vector<32x256xf32> to vector<32xf32>
    %105 = vector.shape_cast %104 : vector<32xf32> to vector<32x1xf32>
    %106 = arith.extf %99 : vector<32x1xbf16> to vector<32x1xf32>
    %107 = math.log %105 : vector<32x1xf32>
    %108 = arith.addf %106, %107 : vector<32x1xf32>
    %cst_44 = arith.constant 0.000000e+00 : bf16
    %109 = vector.broadcast %cst_44 : bf16 to vector<32x256xbf16>
    %110 = arith.select %6, %97, %109 : vector<32x256xi1>, vector<32x256xbf16>
    %111 = arith.extf %110 : vector<32x256xbf16> to vector<32x256xf32>
    %cst_45 = arith.constant dense<0.000000e+00> : vector<32xf32>
    %112 = vector.multi_reduction <add>, %111, %cst_45 [1] : vector<32x256xf32> to vector<32xf32>
    %113 = vector.shape_cast %112 : vector<32xf32> to vector<32x1xf32>
    %114 = arith.subf %113, %108 : vector<32x1xf32>
    %115 = vector.extract_strided_slice %35 {offsets = [96, 0], sizes = [32, 1], strides = [1, 1]} : vector<128x1xf32> to vector<32x1xf32>
    %116 = arith.maximumf %55, %75 : vector<32x1xf32>
    %117 = arith.maximumf %116, %95 : vector<32x1xf32>
    %118 = arith.maximumf %117, %115 : vector<32x1xf32>
    %119 = arith.subf %55, %118 : vector<32x1xf32>
    %120 = math.exp %119 : vector<32x1xf32>
    %121 = arith.subf %75, %118 : vector<32x1xf32>
    %122 = math.exp %121 : vector<32x1xf32>
    %123 = arith.addf %120, %122 : vector<32x1xf32>
    %124 = arith.subf %95, %118 : vector<32x1xf32>
    %125 = math.exp %124 : vector<32x1xf32>
    %126 = arith.addf %123, %125 : vector<32x1xf32>
    %127 = arith.subf %115, %118 : vector<32x1xf32>
    %128 = math.exp %127 : vector<32x1xf32>
    %129 = arith.addf %126, %128 : vector<32x1xf32>
    %130 = math.log %129 : vector<32x1xf32>
    %131 = arith.addf %118, %130 : vector<32x1xf32>
    %132 = arith.subf %55, %131 : vector<32x1xf32>
    %133 = arith.subf %75, %131 : vector<32x1xf32>
    %134 = arith.subf %95, %131 : vector<32x1xf32>
    %135 = arith.subf %115, %131 : vector<32x1xf32>
    %136 = arith.addf %54, %132 : vector<32x1xf32>
    %137 = arith.addf %74, %133 : vector<32x1xf32>
    %138 = arith.addf %94, %134 : vector<32x1xf32>
    %139 = arith.addf %114, %135 : vector<32x1xf32>
    %140 = arith.maximumf %136, %137 : vector<32x1xf32>
    %141 = arith.maximumf %140, %138 : vector<32x1xf32>
    %142 = arith.maximumf %141, %139 : vector<32x1xf32>
    %143 = arith.subf %136, %142 : vector<32x1xf32>
    %144 = math.exp %143 : vector<32x1xf32>
    %145 = arith.subf %137, %142 : vector<32x1xf32>
    %146 = math.exp %145 : vector<32x1xf32>
    %147 = arith.addf %144, %146 : vector<32x1xf32>
    %148 = arith.subf %138, %142 : vector<32x1xf32>
    %149 = math.exp %148 : vector<32x1xf32>
    %150 = arith.addf %147, %149 : vector<32x1xf32>
    %151 = arith.subf %139, %142 : vector<32x1xf32>
    %152 = math.exp %151 : vector<32x1xf32>
    %153 = arith.addf %150, %152 : vector<32x1xf32>
    %154 = math.log %153 : vector<32x1xf32>
    %155 = arith.addf %142, %154 : vector<32x1xf32>
    %c0_46 = arith.constant 0 : index
    %c0_47 = arith.constant 0 : index
    %156 = vector.load %arg11[%c0_46, %c0_47] : memref<1x1xf32, #tpu.memory_space<vmem>>, vector<1x1xf32>
    %157 = arith.mulf %155, %10 : vector<32x1xf32>
    %cst_48 = arith.constant dense<0.000000e+00> : vector<1xf32>
    %158 = vector.multi_reduction <add>, %157, %cst_48 [0] : vector<32x1xf32> to vector<1xf32>
    %159 = vector.shape_cast %158 : vector<1xf32> to vector<1x1xf32>
    %cst_49 = arith.constant 0.000000e+00 : f32
    %160 = vector.broadcast %cst_49 : f32 to vector<1x1xf32>
    %161 = arith.subf %160, %159 : vector<1x1xf32>
    %162 = arith.addf %156, %161 : vector<1x1xf32>
    %c0_50 = arith.constant 0 : index
    %c0_51 = arith.constant 0 : index
    %163 = vector.load %arg11[%c0_50, %c0_51] : memref<1x1xf32, #tpu.memory_space<vmem>>, vector<1x1xf32>
    tpu.vector_store %arg11[%c0_50, %c0_51], %162 {strides = array<i32>} : memref<1x1xf32, #tpu.memory_space<vmem>>, vector<1x1xf32>,
    %c0_52 = arith.constant 0 : index
    %c0_53 = arith.constant 0 : index
    %c0_54 = arith.constant 0 : index
    %164 = vector.load %arg13[%c0_52, %c0_53, %c0_54] : memref<4x1x1xf32, #tpu.memory_space<vmem>>, vector<1x1x1xf32>
    %165 = vector.shape_cast %164 : vector<1x1x1xf32> to vector<1x1xf32>
    %166 = math.exp %132 : vector<32x1xf32>
    %cst_55 = arith.constant dense<0.000000e+00> : vector<1xf32>
    %167 = vector.multi_reduction <add>, %166, %cst_55 [0] : vector<32x1xf32> to vector<1xf32>
    %168 = vector.shape_cast %167 : vector<1xf32> to vector<1x1xf32>
    %169 = arith.addf %165, %168 : vector<1x1xf32>
    %c0_56 = arith.constant 0 : index
    %c0_57 = arith.constant 0 : index
    %c0_58 = arith.constant 0 : index
    %170 = vector.load %arg13[%c0_56, %c0_57, %c0_58] : memref<4x1x1xf32, #tpu.memory_space<vmem>>, vector<1x1x1xf32>
    %171 = vector.shape_cast %170 : vector<1x1x1xf32> to vector<1x1xf32>
    %172 = vector.shape_cast %169 : vector<1x1xf32> to vector<1x1x1xf32>
    tpu.vector_store %arg13[%c0_56, %c0_57, %c0_58], %172 {strides = array<i32>} : memref<4x1x1xf32, #tpu.memory_space<vmem>>, vector<1x1x1xf32>,
    %c1_59 = arith.constant 1 : index
    %c0_60 = arith.constant 0 : index
    %c0_61 = arith.constant 0 : index
    %173 = vector.load %arg13[%c1_59, %c0_60, %c0_61] : memref<4x1x1xf32, #tpu.memory_space<vmem>>, vector<1x1x1xf32>
    %174 = vector.shape_cast %173 : vector<1x1x1xf32> to vector<1x1xf32>
    %175 = math.exp %133 : vector<32x1xf32>
    %cst_62 = arith.constant dense<0.000000e+00> : vector<1xf32>
    %176 = vector.multi_reduction <add>, %175, %cst_62 [0] : vector<32x1xf32> to vector<1xf32>
    %177 = vector.shape_cast %176 : vector<1xf32> to vector<1x1xf32>
    %178 = arith.addf %174, %177 : vector<1x1xf32>
    %c1_63 = arith.constant 1 : index
    %c0_64 = arith.constant 0 : index
    %c0_65 = arith.constant 0 : index
    %179 = vector.load %arg13[%c1_63, %c0_64, %c0_65] : memref<4x1x1xf32, #tpu.memory_space<vmem>>, vector<1x1x1xf32>
    %180 = vector.shape_cast %179 : vector<1x1x1xf32> to vector<1x1xf32>
    %181 = vector.shape_cast %178 : vector<1x1xf32> to vector<1x1x1xf32>
    tpu.vector_store %arg13[%c1_63, %c0_64, %c0_65], %181 {strides = array<i32>} : memref<4x1x1xf32, #tpu.memory_space<vmem>>, vector<1x1x1xf32>,
    %c2_66 = arith.constant 2 : index
    %c0_67 = arith.constant 0 : index
    %c0_68 = arith.constant 0 : index
    %182 = vector.load %arg13[%c2_66, %c0_67, %c0_68] : memref<4x1x1xf32, #tpu.memory_space<vmem>>, vector<1x1x1xf32>
    %183 = vector.shape_cast %182 : vector<1x1x1xf32> to vector<1x1xf32>
    %184 = math.exp %134 : vector<32x1xf32>
    %cst_69 = arith.constant dense<0.000000e+00> : vector<1xf32>
    %185 = vector.multi_reduction <add>, %184, %cst_69 [0] : vector<32x1xf32> to vector<1xf32>
    %186 = vector.shape_cast %185 : vector<1xf32> to vector<1x1xf32>
    %187 = arith.addf %183, %186 : vector<1x1xf32>
    %c2_70 = arith.constant 2 : index
    %c0_71 = arith.constant 0 : index
    %c0_72 = arith.constant 0 : index
    %188 = vector.load %arg13[%c2_70, %c0_71, %c0_72] : memref<4x1x1xf32, #tpu.memory_space<vmem>>, vector<1x1x1xf32>
    %189 = vector.shape_cast %188 : vector<1x1x1xf32> to vector<1x1xf32>
    %190 = vector.shape_cast %187 : vector<1x1xf32> to vector<1x1x1xf32>
    tpu.vector_store %arg13[%c2_70, %c0_71, %c0_72], %190 {strides = array<i32>} : memref<4x1x1xf32, #tpu.memory_space<vmem>>, vector<1x1x1xf32>,
    %c3_73 = arith.constant 3 : index
    %c0_74 = arith.constant 0 : index
    %c0_75 = arith.constant 0 : index
    %191 = vector.load %arg13[%c3_73, %c0_74, %c0_75] : memref<4x1x1xf32, #tpu.memory_space<vmem>>, vector<1x1x1xf32>
    %192 = vector.shape_cast %191 : vector<1x1x1xf32> to vector<1x1xf32>
    %193 = math.exp %135 : vector<32x1xf32>
    %cst_76 = arith.constant dense<0.000000e+00> : vector<1xf32>
    %194 = vector.multi_reduction <add>, %193, %cst_76 [0] : vector<32x1xf32> to vector<1xf32>
    %195 = vector.shape_cast %194 : vector<1xf32> to vector<1x1xf32>
    %196 = arith.addf %192, %195 : vector<1x1xf32>
    %c3_77 = arith.constant 3 : index
    %c0_78 = arith.constant 0 : index
    %c0_79 = arith.constant 0 : index
    %197 = vector.load %arg13[%c3_77, %c0_78, %c0_79] : memref<4x1x1xf32, #tpu.memory_space<vmem>>, vector<1x1x1xf32>
    %198 = vector.shape_cast %197 : vector<1x1x1xf32> to vector<1x1xf32>
    %199 = vector.shape_cast %196 : vector<1x1xf32> to vector<1x1x1xf32>
    tpu.vector_store %arg13[%c3_77, %c0_78, %c0_79], %199 {strides = array<i32>} : memref<4x1x1xf32, #tpu.memory_space<vmem>>, vector<1x1x1xf32>,
    %c0_i32_80 = arith.constant 0 : i32
    %200 = arith.cmpi eq, %arg0, %c0_i32_80 : i32
    %201 = arith.extui %200 : i1 to i32
    %c0_i32_81 = arith.constant 0 : i32
    %202 = arith.cmpi ne, %201, %c0_i32_81 : i32
    scf.if %202 {
      %c0_82 = arith.constant 0 : index
      %c0_83 = arith.constant 0 : index
      %c0_84 = arith.constant 0 : index
      %203 = vector.load %arg13[%c0_82, %c0_83, %c0_84] : memref<4x1x1xf32, #tpu.memory_space<vmem>>, vector<4x1x1xf32>
      %cst_85 = arith.constant 3.125000e-02 : f32
      %204 = vector.broadcast %cst_85 : f32 to vector<4x1x1xf32>
      %205 = arith.mulf %203, %204 : vector<4x1x1xf32>
      %cst_86 = arith.constant 1.000000e-30 : f32
      %206 = vector.broadcast %cst_86 : f32 to vector<4x1x1xf32>
      %207 = arith.maximumf %205, %206 : vector<4x1x1xf32>
      %c0_87 = arith.constant 0 : index
      %c0_88 = arith.constant 0 : index
      %c0_89 = arith.constant 0 : index
      %208 = vector.load %arg10[%c0_87, %c0_88, %c0_89] : memref<4x1x1xf32, #tpu.memory_space<vmem>>, vector<4x1x1xf32>
      %cst_90 = arith.constant dense<0xFF800000> : vector<1x1xf32>
      %209 = vector.multi_reduction <maximumf>, %208, %cst_90 [0] : vector<4x1x1xf32> to vector<1x1xf32>
      %210 = vector.shape_cast %209 : vector<1x1xf32> to vector<1x1x1xf32>
      %211 = vector.broadcast %210 : vector<1x1x1xf32> to vector<4x1x1xf32>
      %212 = arith.subf %208, %211 : vector<4x1x1xf32>
      %213 = math.exp %212 : vector<4x1x1xf32>
      %cst_91 = arith.constant dense<0.000000e+00> : vector<1x1xf32>
      %214 = vector.multi_reduction <add>, %213, %cst_91 [0] : vector<4x1x1xf32> to vector<1x1xf32>
      %215 = vector.shape_cast %214 : vector<1x1xf32> to vector<1x1x1xf32>
      %216 = vector.broadcast %215 : vector<1x1x1xf32> to vector<4x1x1xf32>
      %217 = arith.divf %213, %216 : vector<4x1x1xf32>
      %cst_92 = arith.constant 9.99999974E-6 : f32
      %218 = vector.broadcast %cst_92 : f32 to vector<4x1x1xf32>
      %219 = arith.maximumf %217, %218 : vector<4x1x1xf32>
      %cst_93 = arith.constant dense<0.000000e+00> : vector<1x1xf32>
      %220 = vector.multi_reduction <add>, %219, %cst_93 [0] : vector<4x1x1xf32> to vector<1x1xf32>
      %221 = vector.shape_cast %220 : vector<1x1xf32> to vector<1x1x1xf32>
      %222 = vector.broadcast %221 : vector<1x1x1xf32> to vector<4x1x1xf32>
      %223 = arith.divf %219, %222 : vector<4x1x1xf32>
      %224 = math.log %207 : vector<4x1x1xf32>
      %225 = math.log %223 : vector<4x1x1xf32>
      %226 = arith.subf %224, %225 : vector<4x1x1xf32>
      %227 = arith.mulf %207, %226 : vector<4x1x1xf32>
      %cst_94 = arith.constant dense<0.000000e+00> : vector<1x1xf32>
      %228 = vector.multi_reduction <add>, %227, %cst_94 [0] : vector<4x1x1xf32> to vector<1x1xf32>
      %c0_95 = arith.constant 0 : index
      %c0_96 = arith.constant 0 : index
      %229 = vector.load %arg12[%c0_95, %c0_96] : memref<1x1xf32, #tpu.memory_space<vmem>>, vector<1x1xf32>
      tpu.vector_store %arg12[%c0_95, %c0_96], %228 {strides = array<i32>} : memref<1x1xf32, #tpu.memory_space<vmem>>, vector<1x1xf32>,
    } else {
    }
    return
  }
  func.func @transform_0(%arg0: i32) -> (i32, i32) {
    %c0_i32 = arith.constant 0 : i32
    %c0_i32_0 = arith.constant 0 : i32
    return %arg0, %c0_i32 : i32, i32
  }
  func.func @transform_1(%arg0: i32) -> (i32, i32, i32) {
    %c0_i32 = arith.constant 0 : i32
    %c0_i32_0 = arith.constant 0 : i32
    %c0_i32_1 = arith.constant 0 : i32
    return %c0_i32, %arg0, %c0_i32_0 : i32, i32, i32
  }
  func.func @transform_2(%arg0: i32) -> (i32, i32, i32) {
    %c0_i32 = arith.constant 0 : i32
    %c0_i32_0 = arith.constant 0 : i32
    %c0_i32_1 = arith.constant 0 : i32
    return %c0_i32, %arg0, %c0_i32_0 : i32, i32, i32
  }
  func.func @transform_3(%arg0: i32) -> (i32, i32) {
    %c0_i32 = arith.constant 0 : i32
    %c0_i32_0 = arith.constant 0 : i32
    %c0_i32_1 = arith.constant 0 : i32
    return %c0_i32, %c0_i32_0 : i32, i32
  }
  func.func @transform_4(%arg0: i32) -> (i32, i32) {
    %c0_i32 = arith.constant 0 : i32
    %c0_i32_0 = arith.constant 0 : i32
    %c0_i32_1 = arith.constant 0 : i32
    return %c0_i32, %c0_i32_0 : i32, i32
  }
  func.func @transform_5(%arg0: i32) -> (i32, i32) {
    %c0_i32 = arith.constant 0 : i32
    %c0_i32_0 = arith.constant 0 : i32
    %c0_i32_1 = arith.constant 0 : i32
    return %c0_i32, %c0_i32_0 : i32, i32
  }
  func.func @transform_6(%arg0: i32) -> (i32, i32) {
    %c0_i32 = arith.constant 0 : i32
    %c0_i32_0 = arith.constant 0 : i32
    %c0_i32_1 = arith.constant 0 : i32
    return %c0_i32, %c0_i32_0 : i32, i32
  }
  func.func @transform_7(%arg0: i32) -> (i32, i32) {
    %c0_i32 = arith.constant 0 : i32
    %c0_i32_0 = arith.constant 0 : i32
    %c0_i32_1 = arith.constant 0 : i32
    return %c0_i32, %c0_i32_0 : i32, i32
  }
  func.func @transform_8(%arg0: i32) -> i32 {
    %c0_i32 = arith.constant 0 : i32
    %c0_i32_0 = arith.constant 0 : i32
    return %c0_i32 : i32
  }
  func.func @transform_9(%arg0: i32) -> (i32, i32, i32) {
    %c0_i32 = arith.constant 0 : i32
    %c0_i32_0 = arith.constant 0 : i32
    %c0_i32_1 = arith.constant 0 : i32
    %c0_i32_2 = arith.constant 0 : i32
    return %c0_i32, %c0_i32_0, %c0_i32_1 : i32, i32, i32
  }
  func.func @transform_10(%arg0: i32) -> (i32, i32) {
    %c0_i32 = arith.constant 0 : i32
    %c0_i32_0 = arith.constant 0 : i32
    %c0_i32_1 = arith.constant 0 : i32
    return %c0_i32, %c0_i32_0 : i32, i32
  }
  func.func @transform_11(%arg0: i32) -> (i32, i32) {
    %c0_i32 = arith.constant 0 : i32
    %c0_i32_0 = arith.constant 0 : i32
    %c0_i32_1 = arith.constant 0 : i32
    return %c0_i32, %c0_i32_0 : i32, i32
  }
}

</mosaic_0001>

<llo_original>
// kernel: tpu_custom_call.1
$region0: #{tpu_custom_call.1}
  #allocation0 [shape = 'u32[]', space=smem, size = 0x4, offset = 0x4, fixed_abs, tag = 'smem constant byte address 0x4 - core index']
  #allocation1 [shape = 'u32[72,128]{1,0:T(1,128)}', space=vmem, size = 0x9000, scoped, tag = 'internal scratch']
  #allocation2 [shape = 'f32[4,1,1]{2,1,0:T(1,128)}', space=vmem, size = 0x800, scoped, tag = 'scratch operand']
  #allocation3 [shape = 'f32[1]{0:T(128)S(6)}', space=smem, size = 0x200, scoped, tag = 'scoped memory for tpu_custom_call.1']
  %s0 = inlined_call_operand.vmem [shape: s32[32,1], index: 0, kind: input, shape index: {}]
  %s1 = inlined_call_operand.hbm [shape: bf16[4,32,128], index: 1, kind: input, shape index: {}]
  %s2 = inlined_call_operand.hbm [shape: bf16[4,32,256], index: 2, kind: input, shape index: {}]
  %s3 = inlined_call_operand.hbm [shape: bf16[128,128], index: 3, kind: input, shape index: {}]
  %s4 = inlined_call_operand.vmem [shape: f32[1,128], index: 4, kind: input, shape index: {}]
  %s5 = inlined_call_operand.hbm [shape: bf16[128,128], index: 5, kind: input, shape index: {}]
  %s6 = inlined_call_operand.vmem [shape: f32[1,128], index: 6, kind: input, shape index: {}]
  %s7 = inlined_call_operand.vmem [shape: f32[1,128], index: 7, kind: input, shape index: {}]
  %s8 = inlined_call_operand.<no memory space> [shape: f32[1], index: 8, kind: input, shape index: {}]
  %s9 = inlined_call_operand.vmem [shape: f32[4,1,1], index: 9, kind: input, shape index: {}]
  %s10 = inlined_call_operand.hbm [shape: f32[1,1], index: 10, kind: output, shape index: {0}]
  %s11 = inlined_call_operand.hbm [shape: f32[1,1], index: 11, kind: output, shape index: {1}]
  %12 = xla_tuple %s10, %s11
  %s13 = sld [smem:[#allocation0]]
  $region82: #{tpu_custom_call.1} parent=0
    _
  %s15 = ssub.s32 1, %s13
  %s16 = scalar_select 0, %s15, %s13
  %17 = sst [smem:[#allocation3]] %s8
  $region1: #{tpu_custom_call.1} parent=0
    #allocation4 [shape = 'u8[32768]{0}', space=vmem, size = 0x8000, scoped, tag = 'input window, operand 1, single buffered']
    #allocation5 [shape = 's32[1]{0}', space=sflag, size = 0x4, scoped, tag = 'scoped memory for tpu_custom_call.1']
    #allocation6 [shape = 's32[1]{0}', space=sflag, size = 0x4, scoped, tag = 'scoped memory for tpu_custom_call.1']
    #allocation7 [shape = 'u8[65536]{0}', space=vmem, size = 0x10000, scoped, tag = 'input window, operand 2, single buffered']
    #allocation8 [shape = 's32[1]{0}', space=sflag, size = 0x4, scoped, tag = 'scoped memory for tpu_custom_call.1']
    #allocation9 [shape = 'u8[32768]{0}', space=vmem, size = 0x8000, scoped, tag = 'input window, operand 3, single buffered']
    #allocation10 [shape = 'u8[32768]{0}', space=vmem, size = 0x8000, scoped, tag = 'input window, operand 5, single buffered']
    #allocation11 [shape = 's32[1]{0}', space=sflag, size = 0x4, scoped, tag = 'scoped memory for tpu_custom_call.1']
    #allocation12 [shape = 'u8[512]{0}', space=vmem, size = 0x400, scoped, tag = 'output window, operand 0, single buffered']
    #allocation13 [shape = 'u8[512]{0}', space=vmem, size = 0x400, scoped, tag = 'output window, operand 1, single buffered']
    #allocation14 [shape = 's32[1]{0}', space=sflag, size = 0x4, scoped, tag = 'scoped memory for tpu_custom_call.1']
    %18 = vsyncpa [#allocation5], 0
    %19 = vsyncpa [#allocation8], 0
    %20 = vsyncpa [#allocation11], 0
    %21 = vsyncpa [#allocation6], 0
    %22 = vsyncpa [#allocation14], 0
    // Predicated region
    $region2: #{tpu_custom_call.1} parent=1 // pred_check
      _
    $region3: #{tpu_custom_call.1} parent=1 // pred_check_branch
      %24 = sbr.rel (0) target = $region5
    $region4: #{tpu_custom_call.1} parent=1 // pred_region
      _
    $region5: #{tpu_custom_call.1} parent=1 // pred_fallthru
      _
    // Predicated region
    $region6: #{tpu_custom_call.1} parent=1 // pred_check
      _
    $region7: #{tpu_custom_call.1} parent=1 // pred_check_branch
      %26 = sbr.rel (0) target = $region9
    $region8: #{tpu_custom_call.1} parent=1 // pred_region
      %28 = vsyncadd [#allocation5], 0
      %s29 = sshll.u32 %s1, 4
      %s30 = int_to_ptr.hbm [resolvable:$true] %s29
      %s31 = sshll.u32 [#allocation4], 4
      %s32 = int_to_ptr.vmem [resolvable:$true] %s31
      %37 = dma.hbm_to_vmem [thread:$0]  %s30, 1024, %s32, [#allocation5], 64, 64, 4
    $region9: #{tpu_custom_call.1} parent=1 // pred_fallthru
      _
    // Predicated region
    $region10: #{tpu_custom_call.1} parent=1 // pred_check
      _
    $region11: #{tpu_custom_call.1} parent=1 // pred_check_branch
      %39 = sbr.rel (0) target = $region13
    $region12: #{tpu_custom_call.1} parent=1 // pred_region
      %41 = vsyncadd [#allocation8], 0
      %s42 = sshll.u32 %s2, 4
      %s43 = int_to_ptr.hbm [resolvable:$true] %s42
      %s44 = sshll.u32 [#allocation7], 4
      %s45 = int_to_ptr.vmem [resolvable:$true] %s44
      %50 = dma.hbm_to_vmem [thread:$0]  %s43, 2048, %s45, [#allocation8], 128, 128, 8
    $region13: #{tpu_custom_call.1} parent=1 // pred_fallthru
      _
    // Predicated region
    $region14: #{tpu_custom_call.1} parent=1 // pred_check
      _
    $region15: #{tpu_custom_call.1} parent=1 // pred_check_branch
      %52 = sbr.rel (0) target = $region17
    $region16: #{tpu_custom_call.1} parent=1 // pred_region
      %54 = vsyncadd [#allocation8], 0
      %s55 = sshll.u32 %s3, 4
      %s56 = int_to_ptr.hbm [resolvable:$true] %s55
      %s57 = sshll.u32 [#allocation9], 4
      %s58 = int_to_ptr.vmem [resolvable:$true] %s57
      %63 = dma.hbm_to_vmem [thread:$0]  %s56, 1024, %s58, [#allocation8], 64, 64, 4
    $region17: #{tpu_custom_call.1} parent=1 // pred_fallthru
      _
    // Predicated region
    $region18: #{tpu_custom_call.1} parent=1 // pred_check
      _
    $region19: #{tpu_custom_call.1} parent=1 // pred_check_branch
      %65 = sbr.rel (0) target = $region21
    $region20: #{tpu_custom_call.1} parent=1 // pred_region
      _
    $region21: #{tpu_custom_call.1} parent=1 // pred_fallthru
      _
    // Predicated region
    $region22: #{tpu_custom_call.1} parent=1 // pred_check
      _
    $region23: #{tpu_custom_call.1} parent=1 // pred_check_branch
      %67 = sbr.rel (0) target = $region25
    $region24: #{tpu_custom_call.1} parent=1 // pred_region
      %69 = vsyncadd [#allocation11], 0
      %s70 = sshll.u32 %s5, 4
      %s71 = int_to_ptr.hbm [resolvable:$true] %s70
      %s72 = sshll.u32 [#allocation10], 4
      %s73 = int_to_ptr.vmem [resolvable:$true] %s72
      %78 = dma.hbm_to_vmem [thread:$0]  %s71, 1024, %s73, [#allocation11], 64, 64, 4
    $region25: #{tpu_custom_call.1} parent=1 // pred_fallthru
      _
    // Predicated region
    $region26: #{tpu_custom_call.1} parent=1 // pred_check
      _
    $region27: #{tpu_custom_call.1} parent=1 // pred_check_branch
      %80 = sbr.rel (0) target = $region29
    $region28: #{tpu_custom_call.1} parent=1 // pred_region
      _
    $region29: #{tpu_custom_call.1} parent=1 // pred_fallthru
      _
    // Predicated region
    $region30: #{tpu_custom_call.1} parent=1 // pred_check
      _
    $region31: #{tpu_custom_call.1} parent=1 // pred_check_branch
      %82 = sbr.rel (0) target = $region33
    $region32: #{tpu_custom_call.1} parent=1 // pred_region
      _
    $region33: #{tpu_custom_call.1} parent=1 // pred_fallthru
      _
    // Predicated region
    $region34: #{tpu_custom_call.1} parent=1 // pred_check
      _
    $region35: #{tpu_custom_call.1} parent=1 // pred_check_branch
      %84 = sbr.rel (0) target = $region37
    $region36: #{tpu_custom_call.1} parent=1 // pred_region
      _
    $region37: #{tpu_custom_call.1} parent=1 // pred_fallthru
      _
    // Predicated region
    $region38: #{tpu_custom_call.1} parent=1 // pred_check
      _
    $region39: #{tpu_custom_call.1} parent=1 // pred_check_branch
      %86 = sbr.rel (0) target = $region41
    $region40: #{tpu_custom_call.1} parent=1 // pred_region
      _
    $region41: #{tpu_custom_call.1} parent=1 // pred_fallthru
      _
    // Predicated region
    $region42: #{tpu_custom_call.1} parent=1 // pred_check
      _
    $region43: #{tpu_custom_call.1} parent=1 // pred_check_branch
      %88 = sbr.rel (0) target = $region45
    $region44: #{tpu_custom_call.1} parent=1 // pred_region
      %90 = dma.done [#allocation5], 1024
    $region45: #{tpu_custom_call.1} parent=1 // pred_fallthru
      _
    // Predicated region
    $region46: #{tpu_custom_call.1} parent=1 // pred_check
      _
    $region47: #{tpu_custom_call.1} parent=1 // pred_check_branch
      %92 = sbr.rel (0) target = $region49
    $region48: #{tpu_custom_call.1} parent=1 // pred_region
      %94 = dma.done [#allocation8], 2048
    $region49: #{tpu_custom_call.1} parent=1 // pred_fallthru
      _
    // Predicated region
    $region50: #{tpu_custom_call.1} parent=1 // pred_check
      _
    $region51: #{tpu_custom_call.1} parent=1 // pred_check_branch
      %96 = sbr.rel (0) target = $region53
    $region52: #{tpu_custom_call.1} parent=1 // pred_region
      %98 = dma.done [#allocation8], 1024
    $region53: #{tpu_custom_call.1} parent=1 // pred_fallthru
      _
    // Predicated region
    $region54: #{tpu_custom_call.1} parent=1 // pred_check
      _
    $region55: #{tpu_custom_call.1} parent=1 // pred_check_branch
      %100 = sbr.rel (0) target = $region57
    $region56: #{tpu_custom_call.1} parent=1 // pred_region
      %102 = dma.done [#allocation11], 1024
    $region57: #{tpu_custom_call.1} parent=1 // pred_fallthru
      _
    %p104 = scmp.eq.s32.totalorder 0, 0
    // Predicated region
    $region58: #{tpu_custom_call.1} parent=1 // pred_check
      %p105 = pneg %p104
    $region59: #{tpu_custom_call.1} parent=1 // pred_check_branch
      %107 = sbr.rel (%p105) target = $region61
    $region60: #{tpu_custom_call.1} parent=1 // pred_region
      %vm108 = vcmask 0
      %109 = vst.msk [vmem:[#allocation12] sm:$0x1] %vm108, 0.0
      %110 = vst.msk [vmem:[#allocation13] sm:$0x1] %vm108, 0.0
      %111 = vst.msk [vmem:[#allocation2] sm:$0x1] %vm108, 0.0
      %112 = vst.msk [vmem:[#allocation2 + $0x1] sm:$0x1] %vm108, 0.0
      %113 = vst.msk [vmem:[#allocation2 + $0x2] sm:$0x1] %vm108, 0.0
      %114 = vst.msk [vmem:[#allocation2 + $0x3] sm:$0x1] %vm108, 0.0
    $region61: #{tpu_custom_call.1} parent=1 // pred_fallthru
      _
    %v115 = vld [vmem:[%s0] sm:$0xff]
    %v116 = vld [vmem:[%s0 + $0x8] sm:$0xff]
    %v117 = vld [vmem:[%s0 + $0x10] sm:$0xff]
    %v118 = vld [vmem:[%s0 + $0x18] sm:$0xff]
    %v119 = vlaneseq
    %v120 = vand.u32 %v119, 127
    %v121 = vadd.s32 %v120, 128
    %122 = vset.pattern.permute.xlu0 0
    %123 = vperm.xlu0 %122, %v115
    %v124 = vpop.permute.xlu0 %123
    %125 = vset.pattern.permute.xlu0 0
    %126 = vperm.xlu0 %125, %v116
    %v127 = vpop.permute.xlu0 %126
    %128 = vset.pattern.permute.xlu0 0
    %129 = vperm.xlu0 %128, %v117
    %v130 = vpop.permute.xlu0 %129
    %131 = vset.pattern.permute.xlu0 0
    %132 = vperm.xlu0 %131, %v118
    %v133 = vpop.permute.xlu0 %132
    %vm134 = vcmp.eq.s32.totalorder %v120, %v124
    %vm135 = vcmp.eq.s32.totalorder %v121, %v124
    %vm136 = vcmp.eq.s32.totalorder %v120, %v127
    %vm137 = vcmp.eq.s32.totalorder %v121, %v127
    %vm138 = vcmp.eq.s32.totalorder %v120, %v130
    %vm139 = vcmp.eq.s32.totalorder %v121, %v130
    %vm140 = vcmp.eq.s32.totalorder %v120, %v133
    %vm141 = vcmp.eq.s32.totalorder %v121, %v133
    %vm142 = vcmp.ne.s32.totalorder %v115, 0
    %vm143 = vcmp.ne.s32.totalorder %v116, 0
    %vm144 = vcmp.ne.s32.totalorder %v117, 0
    %vm145 = vcmp.ne.s32.totalorder %v118, 0
    %v146 = vsel %vm142, 1, 0
    %v147 = vsel %vm143, 1, 0
    %v148 = vsel %vm144, 1, 0
    %v149 = vsel %vm145, 1, 0
    %v150 = vcvt.s32.f32 %v146
    %v151 = vcvt.s32.f32 %v147
    %v152 = vcvt.s32.f32 %v148
    %v153 = vcvt.s32.f32 %v149
    %v154 = vld [vmem:[#allocation4] sm:$0xf]
    %v155 = vld [vmem:[#allocation4 + $0x4] sm:$0xf]
    %v156 = vld [vmem:[#allocation4 + $0x8] sm:$0xf]
    %v157 = vld [vmem:[#allocation4 + $0xc] sm:$0xf]
    %v158 = vld [vmem:[#allocation4 + $0x10] sm:$0xf]
    %v159 = vld [vmem:[#allocation4 + $0x14] sm:$0xf]
    %v160 = vld [vmem:[#allocation4 + $0x18] sm:$0xf]
    %v161 = vld [vmem:[#allocation4 + $0x1c] sm:$0xf]
    %v162 = vld [vmem:[#allocation4 + $0x20] sm:$0xf]
    %v163 = vld [vmem:[#allocation4 + $0x24] sm:$0xf]
    %v164 = vld [vmem:[#allocation4 + $0x28] sm:$0xf]
    %v165 = vld [vmem:[#allocation4 + $0x2c] sm:$0xf]
    %v166 = vld [vmem:[#allocation4 + $0x30] sm:$0xf]
    %v167 = vld [vmem:[#allocation4 + $0x34] sm:$0xf]
    %v168 = vld [vmem:[#allocation4 + $0x38] sm:$0xf]
    %v169 = vld [vmem:[#allocation4 + $0x3c] sm:$0xf]
    %v170 = vld [vmem:[#allocation9] sm:$0xf]
    %v171 = vld [vmem:[#allocation9 + $0x4] sm:$0xf]
    %v172 = vld [vmem:[#allocation9 + $0x8] sm:$0xf]
    %v173 = vld [vmem:[#allocation9 + $0xc] sm:$0xf]
    %v174 = vld [vmem:[#allocation9 + $0x10] sm:$0xf]
    %v175 = vld [vmem:[#allocation9 + $0x14] sm:$0xf]
    %v176 = vld [vmem:[#allocation9 + $0x18] sm:$0xf]
    %v177 = vld [vmem:[#allocation9 + $0x1c] sm:$0xf]
    %v178 = vld [vmem:[#allocation9 + $0x20] sm:$0xf]
    %v179 = vld [vmem:[#allocation9 + $0x24] sm:$0xf]
    %v180 = vld [vmem:[#allocation9 + $0x28] sm:$0xf]
    %v181 = vld [vmem:[#allocation9 + $0x2c] sm:$0xf]
    %v182 = vld [vmem:[#allocation9 + $0x30] sm:$0xf]
    %v183 = vld [vmem:[#allocation9 + $0x34] sm:$0xf]
    %v184 = vld [vmem:[#allocation9 + $0x38] sm:$0xf]
    %v185 = vld [vmem:[#allocation9 + $0x3c] sm:$0xf]
    %v186 = vld [vmem:[%s4] sm:$0x1]
    %v188 = vperm.slane %v186, 0
    %v206 = vunpack.c.l.b16 %v154
    %v207 = vunpack.c.l.b16 %v155
    %v208 = vunpack.c.l.b16 %v156
    %v209 = vunpack.c.l.b16 %v157
    %v210 = vunpack.c.l.b16 %v158
    %v211 = vunpack.c.l.b16 %v159
    %v212 = vunpack.c.l.b16 %v160
    %v213 = vunpack.c.l.b16 %v161
    %v214 = vunpack.c.l.b16 %v162
    %v215 = vunpack.c.l.b16 %v163
    %v216 = vunpack.c.l.b16 %v164
    %v217 = vunpack.c.l.b16 %v165
    %v218 = vunpack.c.l.b16 %v166
    %v219 = vunpack.c.l.b16 %v167
    %v220 = vunpack.c.l.b16 %v168
    %v221 = vunpack.c.l.b16 %v169
    %v222 = vpack.c.b16 %v207, %v206
    %v223 = vpack.c.b16 %v209, %v208
    %v224 = vpack.c.b16 %v211, %v210
    %v225 = vpack.c.b16 %v213, %v212
    %v226 = vpack.c.b16 %v215, %v214
    %v227 = vpack.c.b16 %v217, %v216
    %v228 = vpack.c.b16 %v219, %v218
    %v229 = vpack.c.b16 %v221, %v220
    %v254 = vunpack.c.l.b16 %v170
    %v255 = vunpack.c.l.b16 %v171
    %v256 = vunpack.c.l.b16 %v172
    %v257 = vunpack.c.l.b16 %v173
    %v258 = vunpack.c.l.b16 %v174
    %v259 = vunpack.c.l.b16 %v175
    %v260 = vunpack.c.l.b16 %v176
    %v261 = vunpack.c.l.b16 %v177
    %v262 = vunpack.c.l.b16 %v178
    %v263 = vunpack.c.l.b16 %v179
    %v264 = vunpack.c.l.b16 %v180
    %v265 = vunpack.c.l.b16 %v181
    %v266 = vunpack.c.l.b16 %v182
    %v267 = vunpack.c.l.b16 %v183
    %v268 = vunpack.c.l.b16 %v184
    %v269 = vunpack.c.l.b16 %v185
    %v270 = vpack.c.b16 %v255, %v254
    %v271 = vpack.c.b16 %v257, %v256
    %v272 = vpack.c.b16 %v259, %v258
    %v273 = vpack.c.b16 %v261, %v260
    %v274 = vpack.c.b16 %v263, %v262
    %v275 = vpack.c.b16 %v265, %v264
    %v276 = vpack.c.b16 %v267, %v266
    %v277 = vpack.c.b16 %v269, %v268
    %286 = vmatpush.bf16.msra.mxu0 %v277
    %287 = vmatpush.bf16.msra.mxu0 %v276
    %288 = vmatpush.bf16.msra.mxu0 %v275
    %289 = vmatpush.bf16.msra.mxu0 %v274
    %290 = vmatpush.bf16.msra.mxu0 %v273
    %291 = vmatpush.bf16.msra.mxu0 %v272
    %292 = vmatpush.bf16.msra.mxu0 %v271
    %293 = vmatpush.bf16.msra.mxu0 %v270
    %294 = vmatmul.bf16.gmra.mxu0 %v222
    %v295 = vpop.f32.mrf.mxu0
    %v296 = vadd.f32 %v188, %v295
    %v297 = vpop.f32.mrf.mxu0
    %v298 = vadd.f32 %v188, %v297
    %299 = vmatmul.bf16.gmra.mxu0 %v223
    %v300 = vpop.f32.mrf.mxu0
    %v301 = vadd.f32 %v188, %v300
    %v302 = vpop.f32.mrf.mxu0
    %v303 = vadd.f32 %v188, %v302
    %304 = vmatmul.bf16.gmra.mxu0 %v224
    %v305 = vpop.f32.mrf.mxu0
    %v306 = vadd.f32 %v188, %v305
    %v307 = vpop.f32.mrf.mxu0
    %v308 = vadd.f32 %v188, %v307
    %309 = vmatmul.bf16.gmra.mxu0 %v225
    %v310 = vpop.f32.mrf.mxu0
    %v311 = vadd.f32 %v188, %v310
    %v312 = vpop.f32.mrf.mxu0
    %v313 = vadd.f32 %v188, %v312
    %314 = vmatmul.bf16.gmra.mxu0 %v226
    %v315 = vpop.f32.mrf.mxu0
    %v316 = vadd.f32 %v188, %v315
    %v317 = vpop.f32.mrf.mxu0
    %v318 = vadd.f32 %v188, %v317
    %319 = vmatmul.bf16.gmra.mxu0 %v227
    %v320 = vpop.f32.mrf.mxu0
    %v321 = vadd.f32 %v188, %v320
    %v322 = vpop.f32.mrf.mxu0
    %v323 = vadd.f32 %v188, %v322
    %324 = vmatmul.bf16.gmra.mxu0 %v228
    %v325 = vpop.f32.mrf.mxu0
    %v326 = vadd.f32 %v188, %v325
    %v327 = vpop.f32.mrf.mxu0
    %v328 = vadd.f32 %v188, %v327
    %329 = vmatmul.bf16.gmra.mxu0 %v229
    %v330 = vpop.f32.mrf.mxu0
    %v331 = vadd.f32 %v188, %v330
    %v332 = vpop.f32.mrf.mxu0
    %v333 = vadd.f32 %v188, %v332
    %334 = vdwg.mxu0
    %v335 = vmax.f32 %v296, 0.0
    %v336 = vmax.f32 %v298, 0.0
    %v337 = vmax.f32 %v301, 0.0
    %v338 = vmax.f32 %v303, 0.0
    %v339 = vmax.f32 %v306, 0.0
    %v340 = vmax.f32 %v308, 0.0
    %v341 = vmax.f32 %v311, 0.0
    %v342 = vmax.f32 %v313, 0.0
    %v343 = vmax.f32 %v316, 0.0
    %v344 = vmax.f32 %v318, 0.0
    %v345 = vmax.f32 %v321, 0.0
    %v346 = vmax.f32 %v323, 0.0
    %v347 = vmax.f32 %v326, 0.0
    %v348 = vmax.f32 %v328, 0.0
    %v349 = vmax.f32 %v331, 0.0
    %v350 = vmax.f32 %v333, 0.0
    %v351 = vpack.c.bf16 %v336, %v335
    %v352 = vpack.c.bf16 %v338, %v337
    %v353 = vpack.c.bf16 %v340, %v339
    %v354 = vpack.c.bf16 %v342, %v341
    %v355 = vpack.c.bf16 %v344, %v343
    %v356 = vpack.c.bf16 %v346, %v345
    %v357 = vpack.c.bf16 %v348, %v347
    %v358 = vpack.c.bf16 %v350, %v349
    %v359 = vld [vmem:[#allocation10] sm:$0xf]
    %v360 = vld [vmem:[#allocation10 + $0x4] sm:$0xf]
    %v361 = vld [vmem:[#allocation10 + $0x8] sm:$0xf]
    %v362 = vld [vmem:[#allocation10 + $0xc] sm:$0xf]
    %v363 = vld [vmem:[#allocation10 + $0x10] sm:$0xf]
    %v364 = vld [vmem:[#allocation10 + $0x14] sm:$0xf]
    %v365 = vld [vmem:[#allocation10 + $0x18] sm:$0xf]
    %v366 = vld [vmem:[#allocation10 + $0x1c] sm:$0xf]
    %v367 = vld [vmem:[#allocation10 + $0x20] sm:$0xf]
    %v368 = vld [vmem:[#allocation10 + $0x24] sm:$0xf]
    %v369 = vld [vmem:[#allocation10 + $0x28] sm:$0xf]
    %v370 = vld [vmem:[#allocation10 + $0x2c] sm:$0xf]
    %v371 = vld [vmem:[#allocation10 + $0x30] sm:$0xf]
    %v372 = vld [vmem:[#allocation10 + $0x34] sm:$0xf]
    %v373 = vld [vmem:[#allocation10 + $0x38] sm:$0xf]
    %v374 = vld [vmem:[#allocation10 + $0x3c] sm:$0xf]
    %v375 = vld [vmem:[%s6] sm:$0x1]
    %v377 = vperm.slane %v375, 0
    %v395 = vunpack.c.l.b16 %v359
    %v396 = vunpack.c.l.b16 %v360
    %v397 = vunpack.c.l.b16 %v361
    %v398 = vunpack.c.l.b16 %v362
    %v399 = vunpack.c.l.b16 %v363
    %v400 = vunpack.c.l.b16 %v364
    %v401 = vunpack.c.l.b16 %v365
    %v402 = vunpack.c.l.b16 %v366
    %v403 = vunpack.c.l.b16 %v367
    %v404 = vunpack.c.l.b16 %v368
    %v405 = vunpack.c.l.b16 %v369
    %v406 = vunpack.c.l.b16 %v370
    %v407 = vunpack.c.l.b16 %v371
    %v408 = vunpack.c.l.b16 %v372
    %v409 = vunpack.c.l.b16 %v373
    %v410 = vunpack.c.l.b16 %v374
    %v411 = vpack.c.b16 %v396, %v395
    %v412 = vpack.c.b16 %v398, %v397
    %v413 = vpack.c.b16 %v400, %v399
    %v414 = vpack.c.b16 %v402, %v401
    %v415 = vpack.c.b16 %v404, %v403
    %v416 = vpack.c.b16 %v406, %v405
    %v417 = vpack.c.b16 %v408, %v407
    %v418 = vpack.c.b16 %v410, %v409
    %427 = vmatpush.bf16.msra.mxu0 %v418
    %428 = vmatpush.bf16.msra.mxu0 %v417
    %429 = vmatpush.bf16.msra.mxu0 %v416
    %430 = vmatpush.bf16.msra.mxu0 %v415
    %431 = vmatpush.bf16.msra.mxu0 %v414
    %432 = vmatpush.bf16.msra.mxu0 %v413
    %433 = vmatpush.bf16.msra.mxu0 %v412
    %434 = vmatpush.bf16.msra.mxu0 %v411
    %435 = vmatmul.bf16.gmra.mxu0 %v351
    %v436 = vpop.f32.mrf.mxu0
    %v437 = vadd.f32 %v377, %v436
    %v438 = vpop.f32.mrf.mxu0
    %v439 = vadd.f32 %v377, %v438
    %440 = vmatmul.bf16.gmra.mxu0 %v352
    %v441 = vpop.f32.mrf.mxu0
    %v442 = vadd.f32 %v377, %v441
    %v443 = vpop.f32.mrf.mxu0
    %v444 = vadd.f32 %v377, %v443
    %445 = vmatmul.bf16.gmra.mxu0 %v353
    %v446 = vpop.f32.mrf.mxu0
    %v447 = vadd.f32 %v377, %v446
    %v448 = vpop.f32.mrf.mxu0
    %v449 = vadd.f32 %v377, %v448
    %450 = vmatmul.bf16.gmra.mxu0 %v354
    %v451 = vpop.f32.mrf.mxu0
    %v452 = vadd.f32 %v377, %v451
    %v453 = vpop.f32.mrf.mxu0
    %v454 = vadd.f32 %v377, %v453
    %455 = vmatmul.bf16.gmra.mxu0 %v355
    %v456 = vpop.f32.mrf.mxu0
    %v457 = vadd.f32 %v377, %v456
    %v458 = vpop.f32.mrf.mxu0
    %v459 = vadd.f32 %v377, %v458
    %460 = vmatmul.bf16.gmra.mxu0 %v356
    %v461 = vpop.f32.mrf.mxu0
    %v462 = vadd.f32 %v377, %v461
    %v463 = vpop.f32.mrf.mxu0
    %v464 = vadd.f32 %v377, %v463
    %465 = vmatmul.bf16.gmra.mxu0 %v357
    %v466 = vpop.f32.mrf.mxu0
    %v467 = vadd.f32 %v377, %v466
    %v468 = vpop.f32.mrf.mxu0
    %v469 = vadd.f32 %v377, %v468
    %470 = vmatmul.bf16.gmra.mxu0 %v358
    %v471 = vpop.f32.mrf.mxu0
    %v472 = vadd.f32 %v377, %v471
    %v473 = vpop.f32.mrf.mxu0
    %v474 = vadd.f32 %v377, %v473
    %475 = vdwg.mxu0
    %v476 = vmax.f32 %v437, 0.0
    %v477 = vmax.f32 %v439, 0.0
    %v478 = vmax.f32 %v442, 0.0
    %v479 = vmax.f32 %v444, 0.0
    %v480 = vmax.f32 %v447, 0.0
    %v481 = vmax.f32 %v449, 0.0
    %v482 = vmax.f32 %v452, 0.0
    %v483 = vmax.f32 %v454, 0.0
    %v484 = vmax.f32 %v457, 0.0
    %v485 = vmax.f32 %v459, 0.0
    %v486 = vmax.f32 %v462, 0.0
    %v487 = vmax.f32 %v464, 0.0
    %v488 = vmax.f32 %v467, 0.0
    %v489 = vmax.f32 %v469, 0.0
    %v490 = vmax.f32 %v472, 0.0
    %v491 = vmax.f32 %v474, 0.0
    %v492 = vld [vmem:[%s7] sm:$0x1]
    %v494 = vperm.slane %v492, 0
    %v496 = vmul.f32 %v476, %v494
    %v497 = vmul.f32 %v477, %v494
    %v498 = vmul.f32 %v478, %v494
    %v499 = vmul.f32 %v479, %v494
    %v500 = vmul.f32 %v480, %v494
    %v501 = vmul.f32 %v481, %v494
    %v502 = vmul.f32 %v482, %v494
    %v503 = vmul.f32 %v483, %v494
    %v504 = vmul.f32 %v484, %v494
    %v505 = vmul.f32 %v485, %v494
    %v506 = vmul.f32 %v486, %v494
    %v507 = vmul.f32 %v487, %v494
    %v508 = vmul.f32 %v488, %v494
    %v509 = vmul.f32 %v489, %v494
    %v510 = vmul.f32 %v490, %v494
    %v511 = vmul.f32 %v491, %v494
    %512 = vadd.xlane.f32.xlu0 %v496
    %v513 = vpop.xlane.xlu0 %512
    %514 = vadd.xlane.f32.xlu0 %v497
    %v515 = vpop.xlane.xlu0 %514
    %516 = vadd.xlane.f32.xlu0 %v498
    %v517 = vpop.xlane.xlu0 %516
    %518 = vadd.xlane.f32.xlu0 %v499
    %v519 = vpop.xlane.xlu0 %518
    %520 = vadd.xlane.f32.xlu0 %v500
    %v521 = vpop.xlane.xlu0 %520
    %522 = vadd.xlane.f32.xlu0 %v501
    %v523 = vpop.xlane.xlu0 %522
    %524 = vadd.xlane.f32.xlu0 %v502
    %v525 = vpop.xlane.xlu0 %524
    %526 = vadd.xlane.f32.xlu0 %v503
    %v527 = vpop.xlane.xlu0 %526
    %528 = vadd.xlane.f32.xlu0 %v504
    %v529 = vpop.xlane.xlu0 %528
    %530 = vadd.xlane.f32.xlu0 %v505
    %v531 = vpop.xlane.xlu0 %530
    %532 = vadd.xlane.f32.xlu0 %v506
    %v533 = vpop.xlane.xlu0 %532
    %534 = vadd.xlane.f32.xlu0 %v507
    %v535 = vpop.xlane.xlu0 %534
    %536 = vadd.xlane.f32.xlu0 %v508
    %v537 = vpop.xlane.xlu0 %536
    %538 = vadd.xlane.f32.xlu0 %v509
    %v539 = vpop.xlane.xlu0 %538
    %540 = vadd.xlane.f32.xlu0 %v510
    %v541 = vpop.xlane.xlu0 %540
    %542 = vadd.xlane.f32.xlu0 %v511
    %v543 = vpop.xlane.xlu0 %542
    %s544 = sld [smem:[#allocation3]]
    %v545 = vstv %s544
    %v546 = vadd.f32 %v513, %v545
    %v547 = vadd.f32 %v515, %v545
    %v548 = vadd.f32 %v517, %v545
    %v549 = vadd.f32 %v519, %v545
    %v550 = vadd.f32 %v521, %v545
    %v551 = vadd.f32 %v523, %v545
    %v552 = vadd.f32 %v525, %v545
    %v553 = vadd.f32 %v527, %v545
    %v554 = vadd.f32 %v529, %v545
    %v555 = vadd.f32 %v531, %v545
    %v556 = vadd.f32 %v533, %v545
    %v557 = vadd.f32 %v535, %v545
    %v558 = vadd.f32 %v537, %v545
    %v559 = vadd.f32 %v539, %v545
    %v560 = vadd.f32 %v541, %v545
    %v561 = vadd.f32 %v543, %v545
    %v562 = vld [vmem:[#allocation7] sm:$0xff]
    %v563 = vld [vmem:[#allocation7 + $0x8] sm:$0xff]
    %v564 = vld [vmem:[#allocation7 + $0x10] sm:$0xff]
    %v565 = vld [vmem:[#allocation7 + $0x18] sm:$0xff]
    %v566 = vunpack.c.l.bf16 %v562
    %v567 = vunpack.c.h.bf16 %v562
    %v568 = vunpack.c.l.bf16 %v563
    %v569 = vunpack.c.h.bf16 %v563
    %v570 = vunpack.c.l.bf16 %v564
    %v571 = vunpack.c.h.bf16 %v564
    %v572 = vunpack.c.l.bf16 %v565
    %v573 = vunpack.c.h.bf16 %v565
    %v574 = vmax.f32 %v566, %v567
    %575 = vmax.xlane.f32.xlu0 %v574
    %v576 = vpop.xlane.xlu0 %575
    %v577 = vmax.f32 %v568, %v569
    %578 = vmax.xlane.f32.xlu0 %v577
    %v579 = vpop.xlane.xlu0 %578
    %v580 = vmax.f32 %v570, %v571
    %581 = vmax.xlane.f32.xlu0 %v580
    %v582 = vpop.xlane.xlu0 %581
    %v583 = vmax.f32 %v572, %v573
    %584 = vmax.xlane.f32.xlu0 %v583
    %v585 = vpop.xlane.xlu0 %584
    %v586 = vpack.c.bf16 %v576, %v576
    %v587 = vpack.c.bf16 %v579, %v579
    %v588 = vpack.c.bf16 %v582, %v582
    %v589 = vpack.c.bf16 %v585, %v585
    %v590 = vunpack.c.l.bf16 %v586
    %v591 = vunpack.c.l.bf16 %v587
    %v592 = vunpack.c.l.bf16 %v588
    %v593 = vunpack.c.l.bf16 %v589
    %v594 = vsub.f32 %v566, %v590
    %v595 = vsub.f32 %v567, %v590
    %v596 = vsub.f32 %v568, %v591
    %v597 = vsub.f32 %v569, %v591
    %v598 = vsub.f32 %v570, %v592
    %v599 = vsub.f32 %v571, %v592
    %v600 = vsub.f32 %v572, %v593
    %v601 = vsub.f32 %v573, %v593
    %v602 = vpack.c.bf16 %v596, %v594
    %v603 = vpack.c.bf16 %v597, %v595
    %v604 = vpack.c.bf16 %v600, %v598
    %v605 = vpack.c.bf16 %v601, %v599
    %v606 = vunpack.c.l.bf16 %v602
    %v607 = vunpack.c.l.bf16 %v603
    %v608 = vunpack.c.h.bf16 %v602
    %v609 = vunpack.c.h.bf16 %v603
    %v610 = vunpack.c.l.bf16 %v604
    %v611 = vunpack.c.l.bf16 %v605
    %v612 = vunpack.c.h.bf16 %v604
    %v613 = vunpack.c.h.bf16 %v605
    %v614 = vmul.f32 %v606, 1.442695
    %v615 = vpow.pop %v614
    %v616 = vmul.f32 %v607, 1.442695
    %v617 = vpow.pop %v616
    %v618 = vmul.f32 %v608, 1.442695
    %v619 = vpow.pop %v618
    %v620 = vmul.f32 %v609, 1.442695
    %v621 = vpow.pop %v620
    %v622 = vmul.f32 %v610, 1.442695
    %v623 = vpow.pop %v622
    %v624 = vmul.f32 %v611, 1.442695
    %v625 = vpow.pop %v624
    %v626 = vmul.f32 %v612, 1.442695
    %v627 = vpow.pop %v626
    %v628 = vmul.f32 %v613, 1.442695
    %v629 = vpow.pop %v628
    %v630 = vpack.c.bf16 %v619, %v615
    %v631 = vpack.c.bf16 %v621, %v617
    %v632 = vpack.c.bf16 %v627, %v623
    %v633 = vpack.c.bf16 %v629, %v625
    %v634 = vunpack.c.l.bf16 %v630
    %v635 = vunpack.c.l.bf16 %v631
    %v636 = vunpack.c.h.bf16 %v630
    %v637 = vunpack.c.h.bf16 %v631
    %v638 = vunpack.c.l.bf16 %v632
    %v639 = vunpack.c.l.bf16 %v633
    %v640 = vunpack.c.h.bf16 %v632
    %v641 = vunpack.c.h.bf16 %v633
    %v642 = vadd.f32 %v634, %v635
    %643 = vadd.xlane.f32.xlu0 %v642
    %v644 = vpop.xlane.xlu0 %643
    %v645 = vadd.f32 %v636, %v637
    %646 = vadd.xlane.f32.xlu0 %v645
    %v647 = vpop.xlane.xlu0 %646
    %v648 = vadd.f32 %v638, %v639
    %649 = vadd.xlane.f32.xlu0 %v648
    %v650 = vpop.xlane.xlu0 %649
    %v651 = vadd.f32 %v640, %v641
    %652 = vadd.xlane.f32.xlu0 %v651
    %v653 = vpop.xlane.xlu0 %652
    %v654 = vlog2.pop %v644
    %v655 = vmul.f32 %v654, 0.6931472
    %v656 = vlog2.pop %v647
    %v657 = vmul.f32 %v656, 0.6931472
    %v658 = vlog2.pop %v650
    %v659 = vmul.f32 %v658, 0.6931472
    %v660 = vlog2.pop %v653
    %v661 = vmul.f32 %v660, 0.6931472
    %v662 = vadd.f32 %v590, %v655
    %v663 = vadd.f32 %v591, %v657
    %v664 = vadd.f32 %v592, %v659
    %v665 = vadd.f32 %v593, %v661
    %vm666 = vmpackc.low %vm135, %vm134
    %vm667 = vmpackc.low %vm137, %vm136
    %vm668 = vmpackc.low %vm139, %vm138
    %vm669 = vmpackc.low %vm141, %vm140
    %v670 = vsel %vm666, %v562, 0
    %v671 = vsel %vm667, %v563, 0
    %v672 = vsel %vm668, %v564, 0
    %v673 = vsel %vm669, %v565, 0
    %v674 = vunpack.c.l.bf16 %v670
    %v675 = vunpack.c.h.bf16 %v670
    %v676 = vunpack.c.l.bf16 %v671
    %v677 = vunpack.c.h.bf16 %v671
    %v678 = vunpack.c.l.bf16 %v672
    %v679 = vunpack.c.h.bf16 %v672
    %v680 = vunpack.c.l.bf16 %v673
    %v681 = vunpack.c.h.bf16 %v673
    %v682 = vadd.f32 %v674, %v675
    %683 = vadd.xlane.f32.xlu0 %v682
    %v684 = vpop.xlane.xlu0 %683
    %v685 = vadd.f32 %v676, %v677
    %686 = vadd.xlane.f32.xlu0 %v685
    %v687 = vpop.xlane.xlu0 %686
    %v688 = vadd.f32 %v678, %v679
    %689 = vadd.xlane.f32.xlu0 %v688
    %v690 = vpop.xlane.xlu0 %689
    %v691 = vadd.f32 %v680, %v681
    %692 = vadd.xlane.f32.xlu0 %v691
    %v693 = vpop.xlane.xlu0 %692
    %v694 = vsub.f32 %v684, %v662
    %v695 = vsub.f32 %v687, %v663
    %v696 = vsub.f32 %v690, %v664
    %v697 = vsub.f32 %v693, %v665
    %s698 = scalar_lea.vmem [#allocation7], 32
    %v699 = vld [vmem:[%s698] sm:$0xff]
    %v700 = vld [vmem:[%s698 + $0x8] sm:$0xff]
    %v701 = vld [vmem:[%s698 + $0x10] sm:$0xff]
    %v702 = vld [vmem:[%s698 + $0x18] sm:$0xff]
    %v703 = vunpack.c.l.bf16 %v699
    %v704 = vunpack.c.h.bf16 %v699
    %v705 = vunpack.c.l.bf16 %v700
    %v706 = vunpack.c.h.bf16 %v700
    %v707 = vunpack.c.l.bf16 %v701
    %v708 = vunpack.c.h.bf16 %v701
    %v709 = vunpack.c.l.bf16 %v702
    %v710 = vunpack.c.h.bf16 %v702
    %v711 = vmax.f32 %v703, %v704
    %712 = vmax.xlane.f32.xlu0 %v711
    %v713 = vpop.xlane.xlu0 %712
    %v714 = vmax.f32 %v705, %v706
    %715 = vmax.xlane.f32.xlu0 %v714
    %v716 = vpop.xlane.xlu0 %715
    %v717 = vmax.f32 %v707, %v708
    %718 = vmax.xlane.f32.xlu0 %v717
    %v719 = vpop.xlane.xlu0 %718
    %v720 = vmax.f32 %v709, %v710
    %721 = vmax.xlane.f32.xlu0 %v720
    %v722 = vpop.xlane.xlu0 %721
    %v723 = vpack.c.bf16 %v713, %v713
    %v724 = vpack.c.bf16 %v716, %v716
    %v725 = vpack.c.bf16 %v719, %v719
    %v726 = vpack.c.bf16 %v722, %v722
    %v727 = vunpack.c.l.bf16 %v723
    %v728 = vunpack.c.l.bf16 %v724
    %v729 = vunpack.c.l.bf16 %v725
    %v730 = vunpack.c.l.bf16 %v726
    %v731 = vsub.f32 %v703, %v727
    %v732 = vsub.f32 %v704, %v727
    %v733 = vsub.f32 %v705, %v728
    %v734 = vsub.f32 %v706, %v728
    %v735 = vsub.f32 %v707, %v729
    %v736 = vsub.f32 %v708, %v729
    %v737 = vsub.f32 %v709, %v730
    %v738 = vsub.f32 %v710, %v730
    %v739 = vpack.c.bf16 %v733, %v731
    %v740 = vpack.c.bf16 %v734, %v732
    %v741 = vpack.c.bf16 %v737, %v735
    %v742 = vpack.c.bf16 %v738, %v736
    %v743 = vunpack.c.l.bf16 %v739
    %v744 = vunpack.c.l.bf16 %v740
    %v745 = vunpack.c.h.bf16 %v739
    %v746 = vunpack.c.h.bf16 %v740
    %v747 = vunpack.c.l.bf16 %v741
    %v748 = vunpack.c.l.bf16 %v742
    %v749 = vunpack.c.h.bf16 %v741
    %v750 = vunpack.c.h.bf16 %v742
    %v751 = vmul.f32 %v743, 1.442695
    %v752 = vpow.pop %v751
    %v753 = vmul.f32 %v744, 1.442695
    %v754 = vpow.pop %v753
    %v755 = vmul.f32 %v745, 1.442695
    %v756 = vpow.pop %v755
    %v757 = vmul.f32 %v746, 1.442695
    %v758 = vpow.pop %v757
    %v759 = vmul.f32 %v747, 1.442695
    %v760 = vpow.pop %v759
    %v761 = vmul.f32 %v748, 1.442695
    %v762 = vpow.pop %v761
    %v763 = vmul.f32 %v749, 1.442695
    %v764 = vpow.pop %v763
    %v765 = vmul.f32 %v750, 1.442695
    %v766 = vpow.pop %v765
    %v767 = vpack.c.bf16 %v756, %v752
    %v768 = vpack.c.bf16 %v758, %v754
    %v769 = vpack.c.bf16 %v764, %v760
    %v770 = vpack.c.bf16 %v766, %v762
    %v771 = vunpack.c.l.bf16 %v767
    %v772 = vunpack.c.l.bf16 %v768
    %v773 = vunpack.c.h.bf16 %v767
    %v774 = vunpack.c.h.bf16 %v768
    %v775 = vunpack.c.l.bf16 %v769
    %v776 = vunpack.c.l.bf16 %v770
    %v777 = vunpack.c.h.bf16 %v769
    %v778 = vunpack.c.h.bf16 %v770
    %v779 = vadd.f32 %v771, %v772
    %780 = vadd.xlane.f32.xlu0 %v779
    %v781 = vpop.xlane.xlu0 %780
    %v782 = vadd.f32 %v773, %v774
    %783 = vadd.xlane.f32.xlu0 %v782
    %v784 = vpop.xlane.xlu0 %783
    %v785 = vadd.f32 %v775, %v776
    %786 = vadd.xlane.f32.xlu0 %v785
    %v787 = vpop.xlane.xlu0 %786
    %v788 = vadd.f32 %v777, %v778
    %789 = vadd.xlane.f32.xlu0 %v788
    %v790 = vpop.xlane.xlu0 %789
    %v791 = vlog2.pop %v781
    %v792 = vmul.f32 %v791, 0.6931472
    %v793 = vlog2.pop %v784
    %v794 = vmul.f32 %v793, 0.6931472
    %v795 = vlog2.pop %v787
    %v796 = vmul.f32 %v795, 0.6931472
    %v797 = vlog2.pop %v790
    %v798 = vmul.f32 %v797, 0.6931472
    %v799 = vadd.f32 %v727, %v792
    %v800 = vadd.f32 %v728, %v794
    %v801 = vadd.f32 %v729, %v796
    %v802 = vadd.f32 %v730, %v798
    %v803 = vsel %vm666, %v699, 0
    %v804 = vsel %vm667, %v700, 0
    %v805 = vsel %vm668, %v701, 0
    %v806 = vsel %vm669, %v702, 0
    %v807 = vunpack.c.l.bf16 %v803
    %v808 = vunpack.c.h.bf16 %v803
    %v809 = vunpack.c.l.bf16 %v804
    %v810 = vunpack.c.h.bf16 %v804
    %v811 = vunpack.c.l.bf16 %v805
    %v812 = vunpack.c.h.bf16 %v805
    %v813 = vunpack.c.l.bf16 %v806
    %v814 = vunpack.c.h.bf16 %v806
    %v815 = vadd.f32 %v807, %v808
    %816 = vadd.xlane.f32.xlu0 %v815
    %v817 = vpop.xlane.xlu0 %816
    %v818 = vadd.f32 %v809, %v810
    %819 = vadd.xlane.f32.xlu0 %v818
    %v820 = vpop.xlane.xlu0 %819
    %v821 = vadd.f32 %v811, %v812
    %822 = vadd.xlane.f32.xlu0 %v821
    %v823 = vpop.xlane.xlu0 %822
    %v824 = vadd.f32 %v813, %v814
    %825 = vadd.xlane.f32.xlu0 %v824
    %v826 = vpop.xlane.xlu0 %825
    %v827 = vsub.f32 %v817, %v799
    %v828 = vsub.f32 %v820, %v800
    %v829 = vsub.f32 %v823, %v801
    %v830 = vsub.f32 %v826, %v802
    %s831 = scalar_lea.vmem [#allocation7], 64
    %v832 = vld [vmem:[%s831] sm:$0xff]
    %v833 = vld [vmem:[%s831 + $0x8] sm:$0xff]
    %v834 = vld [vmem:[%s831 + $0x10] sm:$0xff]
    %v835 = vld [vmem:[%s831 + $0x18] sm:$0xff]
    %v836 = vunpack.c.l.bf16 %v832
    %v837 = vunpack.c.h.bf16 %v832
    %v838 = vunpack.c.l.bf16 %v833
    %v839 = vunpack.c.h.bf16 %v833
    %v840 = vunpack.c.l.bf16 %v834
    %v841 = vunpack.c.h.bf16 %v834
    %v842 = vunpack.c.l.bf16 %v835
    %v843 = vunpack.c.h.bf16 %v835
    %v844 = vmax.f32 %v836, %v837
    %845 = vmax.xlane.f32.xlu0 %v844
    %v846 = vpop.xlane.xlu0 %845
    %v847 = vmax.f32 %v838, %v839
    %848 = vmax.xlane.f32.xlu0 %v847
    %v849 = vpop.xlane.xlu0 %848
    %v850 = vmax.f32 %v840, %v841
    %851 = vmax.xlane.f32.xlu0 %v850
    %v852 = vpop.xlane.xlu0 %851
    %v853 = vmax.f32 %v842, %v843
    %854 = vmax.xlane.f32.xlu0 %v853
    %v855 = vpop.xlane.xlu0 %854
    %v856 = vpack.c.bf16 %v846, %v846
    %v857 = vpack.c.bf16 %v849, %v849
    %v858 = vpack.c.bf16 %v852, %v852
    %v859 = vpack.c.bf16 %v855, %v855
    %v860 = vunpack.c.l.bf16 %v856
    %v861 = vunpack.c.l.bf16 %v857
    %v862 = vunpack.c.l.bf16 %v858
    %v863 = vunpack.c.l.bf16 %v859
    %v864 = vsub.f32 %v836, %v860
    %v865 = vsub.f32 %v837, %v860
    %v866 = vsub.f32 %v838, %v861
    %v867 = vsub.f32 %v839, %v861
    %v868 = vsub.f32 %v840, %v862
    %v869 = vsub.f32 %v841, %v862
    %v870 = vsub.f32 %v842, %v863
    %v871 = vsub.f32 %v843, %v863
    %v872 = vpack.c.bf16 %v866, %v864
    %v873 = vpack.c.bf16 %v867, %v865
    %v874 = vpack.c.bf16 %v870, %v868
    %v875 = vpack.c.bf16 %v871, %v869
    %v876 = vunpack.c.l.bf16 %v872
    %v877 = vunpack.c.l.bf16 %v873
    %v878 = vunpack.c.h.bf16 %v872
    %v879 = vunpack.c.h.bf16 %v873
    %v880 = vunpack.c.l.bf16 %v874
    %v881 = vunpack.c.l.bf16 %v875
    %v882 = vunpack.c.h.bf16 %v874
    %v883 = vunpack.c.h.bf16 %v875
    %v884 = vmul.f32 %v876, 1.442695
    %v885 = vpow.pop %v884
    %v886 = vmul.f32 %v877, 1.442695
    %v887 = vpow.pop %v886
    %v888 = vmul.f32 %v878, 1.442695
    %v889 = vpow.pop %v888
    %v890 = vmul.f32 %v879, 1.442695
    %v891 = vpow.pop %v890
    %v892 = vmul.f32 %v880, 1.442695
    %v893 = vpow.pop %v892
    %v894 = vmul.f32 %v881, 1.442695
    %v895 = vpow.pop %v894
    %v896 = vmul.f32 %v882, 1.442695
    %v897 = vpow.pop %v896
    %v898 = vmul.f32 %v883, 1.442695
    %v899 = vpow.pop %v898
    %v900 = vpack.c.bf16 %v889, %v885
    %v901 = vpack.c.bf16 %v891, %v887
    %v902 = vpack.c.bf16 %v897, %v893
    %v903 = vpack.c.bf16 %v899, %v895
    %v904 = vunpack.c.l.bf16 %v900
    %v905 = vunpack.c.l.bf16 %v901
    %v906 = vunpack.c.h.bf16 %v900
    %v907 = vunpack.c.h.bf16 %v901
    %v908 = vunpack.c.l.bf16 %v902
    %v909 = vunpack.c.l.bf16 %v903
    %v910 = vunpack.c.h.bf16 %v902
    %v911 = vunpack.c.h.bf16 %v903
    %v912 = vadd.f32 %v904, %v905
    %913 = vadd.xlane.f32.xlu0 %v912
    %v914 = vpop.xlane.xlu0 %913
    %v915 = vadd.f32 %v906, %v907
    %916 = vadd.xlane.f32.xlu0 %v915
    %v917 = vpop.xlane.xlu0 %916
    %v918 = vadd.f32 %v908, %v909
    %919 = vadd.xlane.f32.xlu0 %v918
    %v920 = vpop.xlane.xlu0 %919
    %v921 = vadd.f32 %v910, %v911
    %922 = vadd.xlane.f32.xlu0 %v921
    %v923 = vpop.xlane.xlu0 %922
    %v924 = vlog2.pop %v914
    %v925 = vmul.f32 %v924, 0.6931472
    %v926 = vlog2.pop %v917
    %v927 = vmul.f32 %v926, 0.6931472
    %v928 = vlog2.pop %v920
    %v929 = vmul.f32 %v928, 0.6931472
    %v930 = vlog2.pop %v923
    %v931 = vmul.f32 %v930, 0.6931472
    %v932 = vadd.f32 %v860, %v925
    %v933 = vadd.f32 %v861, %v927
    %v934 = vadd.f32 %v862, %v929
    %v935 = vadd.f32 %v863, %v931
    %v936 = vsel %vm666, %v832, 0
    %v937 = vsel %vm667, %v833, 0
    %v938 = vsel %vm668, %v834, 0
    %v939 = vsel %vm669, %v835, 0
    %v940 = vunpack.c.l.bf16 %v936
    %v941 = vunpack.c.h.bf16 %v936
    %v942 = vunpack.c.l.bf16 %v937
    %v943 = vunpack.c.h.bf16 %v937
    %v944 = vunpack.c.l.bf16 %v938
    %v945 = vunpack.c.h.bf16 %v938
    %v946 = vunpack.c.l.bf16 %v939
    %v947 = vunpack.c.h.bf16 %v939
    %v948 = vadd.f32 %v940, %v941
    %949 = vadd.xlane.f32.xlu0 %v948
    %v950 = vpop.xlane.xlu0 %949
    %v951 = vadd.f32 %v942, %v943
    %952 = vadd.xlane.f32.xlu0 %v951
    %v953 = vpop.xlane.xlu0 %952
    %v954 = vadd.f32 %v944, %v945
    %955 = vadd.xlane.f32.xlu0 %v954
    %v956 = vpop.xlane.xlu0 %955
    %v957 = vadd.f32 %v946, %v947
    %958 = vadd.xlane.f32.xlu0 %v957
    %v959 = vpop.xlane.xlu0 %958
    %v960 = vsub.f32 %v950, %v932
    %v961 = vsub.f32 %v953, %v933
    %v962 = vsub.f32 %v956, %v934
    %v963 = vsub.f32 %v959, %v935
    %s964 = scalar_lea.vmem [#allocation7], 96
    %v965 = vld [vmem:[%s964] sm:$0xff]
    %v966 = vld [vmem:[%s964 + $0x8] sm:$0xff]
    %v967 = vld [vmem:[%s964 + $0x10] sm:$0xff]
    %v968 = vld [vmem:[%s964 + $0x18] sm:$0xff]
    %v969 = vunpack.c.l.bf16 %v965
    %v970 = vunpack.c.h.bf16 %v965
    %v971 = vunpack.c.l.bf16 %v966
    %v972 = vunpack.c.h.bf16 %v966
    %v973 = vunpack.c.l.bf16 %v967
    %v974 = vunpack.c.h.bf16 %v967
    %v975 = vunpack.c.l.bf16 %v968
    %v976 = vunpack.c.h.bf16 %v968
    %v977 = vmax.f32 %v969, %v970
    %978 = vmax.xlane.f32.xlu0 %v977
    %v979 = vpop.xlane.xlu0 %978
    %v980 = vmax.f32 %v971, %v972
    %981 = vmax.xlane.f32.xlu0 %v980
    %v982 = vpop.xlane.xlu0 %981
    %v983 = vmax.f32 %v973, %v974
    %984 = vmax.xlane.f32.xlu0 %v983
    %v985 = vpop.xlane.xlu0 %984
    %v986 = vmax.f32 %v975, %v976
    %987 = vmax.xlane.f32.xlu0 %v986
    %v988 = vpop.xlane.xlu0 %987
    %v989 = vpack.c.bf16 %v979, %v979
    %v990 = vpack.c.bf16 %v982, %v982
    %v991 = vpack.c.bf16 %v985, %v985
    %v992 = vpack.c.bf16 %v988, %v988
    %v993 = vunpack.c.l.bf16 %v989
    %v994 = vunpack.c.l.bf16 %v990
    %v995 = vunpack.c.l.bf16 %v991
    %v996 = vunpack.c.l.bf16 %v992
    %v997 = vsub.f32 %v969, %v993
    %v998 = vsub.f32 %v970, %v993
    %v999 = vsub.f32 %v971, %v994
    %v1000 = vsub.f32 %v972, %v994
    %v1001 = vsub.f32 %v973, %v995
    %v1002 = vsub.f32 %v974, %v995
    %v1003 = vsub.f32 %v975, %v996
    %v1004 = vsub.f32 %v976, %v996
    %v1005 = vpack.c.bf16 %v999, %v997
    %v1006 = vpack.c.bf16 %v1000, %v998
    %v1007 = vpack.c.bf16 %v1003, %v1001
    %v1008 = vpack.c.bf16 %v1004, %v1002
    %v1009 = vunpack.c.l.bf16 %v1005
    %v1010 = vunpack.c.l.bf16 %v1006
    %v1011 = vunpack.c.h.bf16 %v1005
    %v1012 = vunpack.c.h.bf16 %v1006
    %v1013 = vunpack.c.l.bf16 %v1007
    %v1014 = vunpack.c.l.bf16 %v1008
    %v1015 = vunpack.c.h.bf16 %v1007
    %v1016 = vunpack.c.h.bf16 %v1008
    %v1017 = vmul.f32 %v1009, 1.442695
    %v1018 = vpow.pop %v1017
    %v1019 = vmul.f32 %v1010, 1.442695
    %v1020 = vpow.pop %v1019
    %v1021 = vmul.f32 %v1011, 1.442695
    %v1022 = vpow.pop %v1021
    %v1023 = vmul.f32 %v1012, 1.442695
    %v1024 = vpow.pop %v1023
    %v1025 = vmul.f32 %v1013, 1.442695
    %v1026 = vpow.pop %v1025
    %v1027 = vmul.f32 %v1014, 1.442695
    %v1028 = vpow.pop %v1027
    %v1029 = vmul.f32 %v1015, 1.442695
    %v1030 = vpow.pop %v1029
    %v1031 = vmul.f32 %v1016, 1.442695
    %v1032 = vpow.pop %v1031
    %v1033 = vpack.c.bf16 %v1022, %v1018
    %v1034 = vpack.c.bf16 %v1024, %v1020
    %v1035 = vpack.c.bf16 %v1030, %v1026
    %v1036 = vpack.c.bf16 %v1032, %v1028
    %v1037 = vunpack.c.l.bf16 %v1033
    %v1038 = vunpack.c.l.bf16 %v1034
    %v1039 = vunpack.c.h.bf16 %v1033
    %v1040 = vunpack.c.h.bf16 %v1034
    %v1041 = vunpack.c.l.bf16 %v1035
    %v1042 = vunpack.c.l.bf16 %v1036
    %v1043 = vunpack.c.h.bf16 %v1035
    %v1044 = vunpack.c.h.bf16 %v1036
    %v1045 = vadd.f32 %v1037, %v1038
    %1046 = vadd.xlane.f32.xlu0 %v1045
    %v1047 = vpop.xlane.xlu0 %1046
    %v1048 = vadd.f32 %v1039, %v1040
    %1049 = vadd.xlane.f32.xlu0 %v1048
    %v1050 = vpop.xlane.xlu0 %1049
    %v1051 = vadd.f32 %v1041, %v1042
    %1052 = vadd.xlane.f32.xlu0 %v1051
    %v1053 = vpop.xlane.xlu0 %1052
    %v1054 = vadd.f32 %v1043, %v1044
    %1055 = vadd.xlane.f32.xlu0 %v1054
    %v1056 = vpop.xlane.xlu0 %1055
    %v1057 = vlog2.pop %v1047
    %v1058 = vmul.f32 %v1057, 0.6931472
    %v1059 = vlog2.pop %v1050
    %v1060 = vmul.f32 %v1059, 0.6931472
    %v1061 = vlog2.pop %v1053
    %v1062 = vmul.f32 %v1061, 0.6931472
    %v1063 = vlog2.pop %v1056
    %v1064 = vmul.f32 %v1063, 0.6931472
    %v1065 = vadd.f32 %v993, %v1058
    %v1066 = vadd.f32 %v994, %v1060
    %v1067 = vadd.f32 %v995, %v1062
    %v1068 = vadd.f32 %v996, %v1064
    %v1069 = vsel %vm666, %v965, 0
    %v1070 = vsel %vm667, %v966, 0
    %v1071 = vsel %vm668, %v967, 0
    %v1072 = vsel %vm669, %v968, 0
    %v1073 = vunpack.c.l.bf16 %v1069
    %v1074 = vunpack.c.h.bf16 %v1069
    %v1075 = vunpack.c.l.bf16 %v1070
    %v1076 = vunpack.c.h.bf16 %v1070
    %v1077 = vunpack.c.l.bf16 %v1071
    %v1078 = vunpack.c.h.bf16 %v1071
    %v1079 = vunpack.c.l.bf16 %v1072
    %v1080 = vunpack.c.h.bf16 %v1072
    %v1081 = vadd.f32 %v1073, %v1074
    %1082 = vadd.xlane.f32.xlu0 %v1081
    %v1083 = vpop.xlane.xlu0 %1082
    %v1084 = vadd.f32 %v1075, %v1076
    %1085 = vadd.xlane.f32.xlu0 %v1084
    %v1086 = vpop.xlane.xlu0 %1085
    %v1087 = vadd.f32 %v1077, %v1078
    %1088 = vadd.xlane.f32.xlu0 %v1087
    %v1089 = vpop.xlane.xlu0 %1088
    %v1090 = vadd.f32 %v1079, %v1080
    %1091 = vadd.xlane.f32.xlu0 %v1090
    %v1092 = vpop.xlane.xlu0 %1091
    %v1093 = vsub.f32 %v1083, %v1065
    %v1094 = vsub.f32 %v1086, %v1066
    %v1095 = vsub.f32 %v1089, %v1067
    %v1096 = vsub.f32 %v1092, %v1068
    %v1097 = vmax.f32 %v546, %v550
    %v1098 = vmax.f32 %v547, %v551
    %v1099 = vmax.f32 %v548, %v552
    %v1100 = vmax.f32 %v549, %v553
    %v1101 = vmax.f32 %v1097, %v554
    %v1102 = vmax.f32 %v1098, %v555
    %v1103 = vmax.f32 %v1099, %v556
    %v1104 = vmax.f32 %v1100, %v557
    %v1105 = vmax.f32 %v1101, %v558
    %v1106 = vmax.f32 %v1102, %v559
    %v1107 = vmax.f32 %v1103, %v560
    %v1108 = vmax.f32 %v1104, %v561
    %v1109 = vsub.f32 %v546, %v1105
    %v1110 = vsub.f32 %v547, %v1106
    %v1111 = vsub.f32 %v548, %v1107
    %v1112 = vsub.f32 %v549, %v1108
    %v1113 = vmul.f32 %v1109, 1.442695
    %v1114 = vpow.pop %v1113
    %v1115 = vmul.f32 %v1110, 1.442695
    %v1116 = vpow.pop %v1115
    %v1117 = vmul.f32 %v1111, 1.442695
    %v1118 = vpow.pop %v1117
    %v1119 = vmul.f32 %v1112, 1.442695
    %v1120 = vpow.pop %v1119
    %v1121 = vsub.f32 %v550, %v1105
    %v1122 = vsub.f32 %v551, %v1106
    %v1123 = vsub.f32 %v552, %v1107
    %v1124 = vsub.f32 %v553, %v1108
    %v1125 = vmul.f32 %v1121, 1.442695
    %v1126 = vpow.pop %v1125
    %v1127 = vmul.f32 %v1122, 1.442695
    %v1128 = vpow.pop %v1127
    %v1129 = vmul.f32 %v1123, 1.442695
    %v1130 = vpow.pop %v1129
    %v1131 = vmul.f32 %v1124, 1.442695
    %v1132 = vpow.pop %v1131
    %v1133 = vadd.f32 %v1114, %v1126
    %v1134 = vadd.f32 %v1116, %v1128
    %v1135 = vadd.f32 %v1118, %v1130
    %v1136 = vadd.f32 %v1120, %v1132
    %v1137 = vsub.f32 %v554, %v1105
    %v1138 = vsub.f32 %v555, %v1106
    %v1139 = vsub.f32 %v556, %v1107
    %v1140 = vsub.f32 %v557, %v1108
    %v1141 = vmul.f32 %v1137, 1.442695
    %v1142 = vpow.pop %v1141
    %v1143 = vmul.f32 %v1138, 1.442695
    %v1144 = vpow.pop %v1143
    %v1145 = vmul.f32 %v1139, 1.442695
    %v1146 = vpow.pop %v1145
    %v1147 = vmul.f32 %v1140, 1.442695
    %v1148 = vpow.pop %v1147
    %v1149 = vadd.f32 %v1133, %v1142
    %v1150 = vadd.f32 %v1134, %v1144
    %v1151 = vadd.f32 %v1135, %v1146
    %v1152 = vadd.f32 %v1136, %v1148
    %v1153 = vsub.f32 %v558, %v1105
    %v1154 = vsub.f32 %v559, %v1106
    %v1155 = vsub.f32 %v560, %v1107
    %v1156 = vsub.f32 %v561, %v1108
    %v1157 = vmul.f32 %v1153, 1.442695
    %v1158 = vpow.pop %v1157
    %v1159 = vmul.f32 %v1154, 1.442695
    %v1160 = vpow.pop %v1159
    %v1161 = vmul.f32 %v1155, 1.442695
    %v1162 = vpow.pop %v1161
    %v1163 = vmul.f32 %v1156, 1.442695
    %v1164 = vpow.pop %v1163
    %v1165 = vadd.f32 %v1149, %v1158
    %v1166 = vadd.f32 %v1150, %v1160
    %v1167 = vadd.f32 %v1151, %v1162
    %v1168 = vadd.f32 %v1152, %v1164
    %v1169 = vlog2.pop %v1165
    %v1170 = vmul.f32 %v1169, 0.6931472
    %v1171 = vlog2.pop %v1166
    %v1172 = vmul.f32 %v1171, 0.6931472
    %v1173 = vlog2.pop %v1167
    %v1174 = vmul.f32 %v1173, 0.6931472
    %v1175 = vlog2.pop %v1168
    %v1176 = vmul.f32 %v1175, 0.6931472
    %v1177 = vadd.f32 %v1105, %v1170
    %v1178 = vadd.f32 %v1106, %v1172
    %v1179 = vadd.f32 %v1107, %v1174
    %v1180 = vadd.f32 %v1108, %v1176
    %v1181 = vsub.f32 %v546, %v1177
    %v1182 = vsub.f32 %v547, %v1178
    %v1183 = vsub.f32 %v548, %v1179
    %v1184 = vsub.f32 %v549, %v1180
    %v1185 = vsub.f32 %v550, %v1177
    %v1186 = vsub.f32 %v551, %v1178
    %v1187 = vsub.f32 %v552, %v1179
    %v1188 = vsub.f32 %v553, %v1180
    %v1189 = vsub.f32 %v554, %v1177
    %v1190 = vsub.f32 %v555, %v1178
    %v1191 = vsub.f32 %v556, %v1179
    %v1192 = vsub.f32 %v557, %v1180
    %v1193 = vsub.f32 %v558, %v1177
    %v1194 = vsub.f32 %v559, %v1178
    %v1195 = vsub.f32 %v560, %v1179
    %v1196 = vsub.f32 %v561, %v1180
    %v1197 = vadd.f32 %v694, %v1181
    %v1198 = vadd.f32 %v695, %v1182
    %v1199 = vadd.f32 %v696, %v1183
    %v1200 = vadd.f32 %v697, %v1184
    %v1201 = vadd.f32 %v827, %v1185
    %v1202 = vadd.f32 %v828, %v1186
    %v1203 = vadd.f32 %v829, %v1187
    %v1204 = vadd.f32 %v830, %v1188
    %v1205 = vadd.f32 %v960, %v1189
    %v1206 = vadd.f32 %v961, %v1190
    %v1207 = vadd.f32 %v962, %v1191
    %v1208 = vadd.f32 %v963, %v1192
    %v1209 = vadd.f32 %v1093, %v1193
    %v1210 = vadd.f32 %v1094, %v1194
    %v1211 = vadd.f32 %v1095, %v1195
    %v1212 = vadd.f32 %v1096, %v1196
    %v1213 = vmax.f32 %v1197, %v1201
    %v1214 = vmax.f32 %v1198, %v1202
    %v1215 = vmax.f32 %v1199, %v1203
    %v1216 = vmax.f32 %v1200, %v1204
    %v1217 = vmax.f32 %v1213, %v1205
    %v1218 = vmax.f32 %v1214, %v1206
    %v1219 = vmax.f32 %v1215, %v1207
    %v1220 = vmax.f32 %v1216, %v1208
    %v1221 = vmax.f32 %v1217, %v1209
    %v1222 = vmax.f32 %v1218, %v1210
    %v1223 = vmax.f32 %v1219, %v1211
    %v1224 = vmax.f32 %v1220, %v1212
    %v1225 = vsub.f32 %v1197, %v1221
    %v1226 = vsub.f32 %v1198, %v1222
    %v1227 = vsub.f32 %v1199, %v1223
    %v1228 = vsub.f32 %v1200, %v1224
    %v1229 = vmul.f32 %v1225, 1.442695
    %v1230 = vpow.pop %v1229
    %v1231 = vmul.f32 %v1226, 1.442695
    %v1232 = vpow.pop %v1231
    %v1233 = vmul.f32 %v1227, 1.442695
    %v1234 = vpow.pop %v1233
    %v1235 = vmul.f32 %v1228, 1.442695
    %v1236 = vpow.pop %v1235
    %v1237 = vsub.f32 %v1201, %v1221
    %v1238 = vsub.f32 %v1202, %v1222
    %v1239 = vsub.f32 %v1203, %v1223
    %v1240 = vsub.f32 %v1204, %v1224
    %v1241 = vmul.f32 %v1237, 1.442695
    %v1242 = vpow.pop %v1241
    %v1243 = vmul.f32 %v1238, 1.442695
    %v1244 = vpow.pop %v1243
    %v1245 = vmul.f32 %v1239, 1.442695
    %v1246 = vpow.pop %v1245
    %v1247 = vmul.f32 %v1240, 1.442695
    %v1248 = vpow.pop %v1247
    %v1249 = vadd.f32 %v1230, %v1242
    %v1250 = vadd.f32 %v1232, %v1244
    %v1251 = vadd.f32 %v1234, %v1246
    %v1252 = vadd.f32 %v1236, %v1248
    %v1253 = vsub.f32 %v1205, %v1221
    %v1254 = vsub.f32 %v1206, %v1222
    %v1255 = vsub.f32 %v1207, %v1223
    %v1256 = vsub.f32 %v1208, %v1224
    %v1257 = vmul.f32 %v1253, 1.442695
    %v1258 = vpow.pop %v1257
    %v1259 = vmul.f32 %v1254, 1.442695
    %v1260 = vpow.pop %v1259
    %v1261 = vmul.f32 %v1255, 1.442695
    %v1262 = vpow.pop %v1261
    %v1263 = vmul.f32 %v1256, 1.442695
    %v1264 = vpow.pop %v1263
    %v1265 = vadd.f32 %v1249, %v1258
    %v1266 = vadd.f32 %v1250, %v1260
    %v1267 = vadd.f32 %v1251, %v1262
    %v1268 = vadd.f32 %v1252, %v1264
    %v1269 = vsub.f32 %v1209, %v1221
    %v1270 = vsub.f32 %v1210, %v1222
    %v1271 = vsub.f32 %v1211, %v1223
    %v1272 = vsub.f32 %v1212, %v1224
    %v1273 = vmul.f32 %v1269, 1.442695
    %v1274 = vpow.pop %v1273
    %v1275 = vmul.f32 %v1270, 1.442695
    %v1276 = vpow.pop %v1275
    %v1277 = vmul.f32 %v1271, 1.442695
    %v1278 = vpow.pop %v1277
    %v1279 = vmul.f32 %v1272, 1.442695
    %v1280 = vpow.pop %v1279
    %v1281 = vadd.f32 %v1265, %v1274
    %v1282 = vadd.f32 %v1266, %v1276
    %v1283 = vadd.f32 %v1267, %v1278
    %v1284 = vadd.f32 %v1268, %v1280
    %v1285 = vlog2.pop %v1281
    %v1286 = vmul.f32 %v1285, 0.6931472
    %v1287 = vlog2.pop %v1282
    %v1288 = vmul.f32 %v1287, 0.6931472
    %v1289 = vlog2.pop %v1283
    %v1290 = vmul.f32 %v1289, 0.6931472
    %v1291 = vlog2.pop %v1284
    %v1292 = vmul.f32 %v1291, 0.6931472
    %v1293 = vadd.f32 %v1221, %v1286
    %v1294 = vadd.f32 %v1222, %v1288
    %v1295 = vadd.f32 %v1223, %v1290
    %v1296 = vadd.f32 %v1224, %v1292
    %v1297 = vld [vmem:[#allocation12] sm:$0x1]
    %v1298 = vmul.f32 %v1293, %v150
    %v1299 = vmul.f32 %v1294, %v151
    %v1300 = vmul.f32 %v1295, %v152
    %v1301 = vmul.f32 %v1296, %v153
    %vm1302 = vcmask 7168
    %v1303 = vsel %vm1302, %v1298, 0.0
    %v1304 = vsel %vm1302, %v1299, 0.0
    %v1305 = vadd.f32 %v1303, %v1304
    %v1306 = vsel %vm1302, %v1300, 0.0
    %v1307 = vadd.f32 %v1305, %v1306
    %v1308 = vsel %vm1302, %v1301, 0.0
    %v1309 = vadd.f32 %v1307, %v1308
    %v1310 = vrot.slane %v1309, 4
    %v1311 = vadd.f32 %v1309, %v1310
    %v1312 = vrot.slane %v1311, 2
    %v1313 = vadd.f32 %v1311, %v1312
    %v1314 = vrot.slane %v1313, 1
    %v1315 = vadd.f32 %v1313, %v1314
    %v1316 = vsub.f32 0.0, %v1315
    %v1317 = vadd.f32 %v1297, %v1316
    %vm1318 = vcmask 0
    %1319 = vst.msk [vmem:[#allocation12] sm:$0x1] %vm1318, %v1317
    %v1320 = vld [vmem:[#allocation2] sm:$0x1]
    %v1321 = vmul.f32 %v1181, 1.442695
    %v1322 = vpow.pop %v1321
    %v1323 = vmul.f32 %v1182, 1.442695
    %v1324 = vpow.pop %v1323
    %v1325 = vmul.f32 %v1183, 1.442695
    %v1326 = vpow.pop %v1325
    %v1327 = vmul.f32 %v1184, 1.442695
    %v1328 = vpow.pop %v1327
    %v1329 = vadd.f32 %v1322, %v1324
    %v1330 = vadd.f32 %v1329, %v1326
    %v1331 = vadd.f32 %v1330, %v1328
    %v1332 = vrot.slane %v1331, 4
    %v1333 = vadd.f32 %v1331, %v1332
    %v1334 = vrot.slane %v1333, 2
    %v1335 = vadd.f32 %v1333, %v1334
    %v1336 = vrot.slane %v1335, 1
    %v1337 = vadd.f32 %v1335, %v1336
    %v1338 = vadd.f32 %v1320, %v1337
    %1339 = vst.msk [vmem:[#allocation2] sm:$0x1] %vm1318, %v1338
    %s1340 = scalar_lea.vmem [#allocation2], 1
    %v1341 = vld [vmem:[%s1340] sm:$0x1]
    %v1342 = vmul.f32 %v1185, 1.442695
    %v1343 = vpow.pop %v1342
    %v1344 = vmul.f32 %v1186, 1.442695
    %v1345 = vpow.pop %v1344
    %v1346 = vmul.f32 %v1187, 1.442695
    %v1347 = vpow.pop %v1346
    %v1348 = vmul.f32 %v1188, 1.442695
    %v1349 = vpow.pop %v1348
    %v1350 = vadd.f32 %v1343, %v1345
    %v1351 = vadd.f32 %v1350, %v1347
    %v1352 = vadd.f32 %v1351, %v1349
    %v1353 = vrot.slane %v1352, 4
    %v1354 = vadd.f32 %v1352, %v1353
    %v1355 = vrot.slane %v1354, 2
    %v1356 = vadd.f32 %v1354, %v1355
    %v1357 = vrot.slane %v1356, 1
    %v1358 = vadd.f32 %v1356, %v1357
    %v1359 = vadd.f32 %v1341, %v1358
    %1360 = vst.msk [vmem:[%s1340] sm:$0x1] %vm1318, %v1359
    %s1361 = scalar_lea.vmem [#allocation2], 2
    %v1362 = vld [vmem:[%s1361] sm:$0x1]
    %v1363 = vmul.f32 %v1189, 1.442695
    %v1364 = vpow.pop %v1363
    %v1365 = vmul.f32 %v1190, 1.442695
    %v1366 = vpow.pop %v1365
    %v1367 = vmul.f32 %v1191, 1.442695
    %v1368 = vpow.pop %v1367
    %v1369 = vmul.f32 %v1192, 1.442695
    %v1370 = vpow.pop %v1369
    %v1371 = vadd.f32 %v1364, %v1366
    %v1372 = vadd.f32 %v1371, %v1368
    %v1373 = vadd.f32 %v1372, %v1370
    %v1374 = vrot.slane %v1373, 4
    %v1375 = vadd.f32 %v1373, %v1374
    %v1376 = vrot.slane %v1375, 2
    %v1377 = vadd.f32 %v1375, %v1376
    %v1378 = vrot.slane %v1377, 1
    %v1379 = vadd.f32 %v1377, %v1378
    %v1380 = vadd.f32 %v1362, %v1379
    %1381 = vst.msk [vmem:[%s1361] sm:$0x1] %vm1318, %v1380
    %s1382 = scalar_lea.vmem [#allocation2], 3
    %v1383 = vld [vmem:[%s1382] sm:$0x1]
    %v1384 = vmul.f32 %v1193, 1.442695
    %v1385 = vpow.pop %v1384
    %v1386 = vmul.f32 %v1194, 1.442695
    %v1387 = vpow.pop %v1386
    %v1388 = vmul.f32 %v1195, 1.442695
    %v1389 = vpow.pop %v1388
    %v1390 = vmul.f32 %v1196, 1.442695
    %v1391 = vpow.pop %v1390
    %v1392 = vadd.f32 %v1385, %v1387
    %v1393 = vadd.f32 %v1392, %v1389
    %v1394 = vadd.f32 %v1393, %v1391
    %v1395 = vrot.slane %v1394, 4
    %v1396 = vadd.f32 %v1394, %v1395
    %v1397 = vrot.slane %v1396, 2
    %v1398 = vadd.f32 %v1396, %v1397
    %v1399 = vrot.slane %v1398, 1
    %v1400 = vadd.f32 %v1398, %v1399
    %v1401 = vadd.f32 %v1383, %v1400
    %1402 = vst.msk [vmem:[%s1382] sm:$0x1] %vm1318, %v1401
    // Predicated region
    $region62: #{tpu_custom_call.1} parent=1 // pred_check
      %p1403 = pneg %p104
    $region63: #{tpu_custom_call.1} parent=1 // pred_check_branch
      %1405 = sbr.rel (%p1403) target = $region65
    $region64: #{tpu_custom_call.1} parent=1 // pred_region
      %v1406 = vld [vmem:[#allocation2] sm:$0x1]
      %v1407 = vld [vmem:[#allocation2 + $0x1] sm:$0x1]
      %v1408 = vld [vmem:[#allocation2 + $0x2] sm:$0x1]
      %v1409 = vld [vmem:[#allocation2 + $0x3] sm:$0x1]
      %v1410 = vmul.f32 %v1406, 0.03125
      %v1411 = vmul.f32 %v1407, 0.03125
      %v1412 = vmul.f32 %v1408, 0.03125
      %v1413 = vmul.f32 %v1409, 0.03125
      %v1414 = vmax.f32 %v1410, 1e-30
      %v1415 = vmax.f32 %v1411, 1e-30
      %v1416 = vmax.f32 %v1412, 1e-30
      %v1417 = vmax.f32 %v1413, 1e-30
      %v1418 = vld [vmem:[%s9] sm:$0x1]
      %v1419 = vld [vmem:[%s9 + $0x1] sm:$0x1]
      %v1420 = vld [vmem:[%s9 + $0x2] sm:$0x1]
      %v1421 = vld [vmem:[%s9 + $0x3] sm:$0x1]
      %v1422 = vlaneseq
      %vm1423 = vcmp.ge.s32.totalorder %v1422, 0
      %vm1424 = vcmp.lt.s32.totalorder %v1422, 1
      %vm1425 = vmand %vm1423, %vm1424
      %v1426 = vsel %vm1425, %v1418, -inf
      %v1427 = vsel %vm1425, %v1419, -inf
      %v1428 = vsel %vm1425, %v1420, -inf
      %v1429 = vsel %vm1425, %v1421, -inf
      %v1430 = vmax.f32 %v1426, %v1427
      %v1431 = vmax.f32 %v1428, %v1429
      %v1432 = vmax.f32 %v1430, %v1431
      %v1433 = vsub.f32 %v1418, %v1432
      %v1434 = vsub.f32 %v1419, %v1432
      %v1435 = vsub.f32 %v1420, %v1432
      %v1436 = vsub.f32 %v1421, %v1432
      %v1437 = vmul.f32 %v1433, 1.442695
      %v1438 = vpow.pop %v1437
      %v1439 = vmul.f32 %v1434, 1.442695
      %v1440 = vpow.pop %v1439
      %v1441 = vmul.f32 %v1435, 1.442695
      %v1442 = vpow.pop %v1441
      %v1443 = vmul.f32 %v1436, 1.442695
      %v1444 = vpow.pop %v1443
      %v1445 = vsel %vm1318, %v1438, 0.0
      %v1446 = vsel %vm1318, %v1440, 0.0
      %v1447 = vadd.f32 %v1445, %v1446
      %v1448 = vsel %vm1318, %v1442, 0.0
      %v1449 = vadd.f32 %v1447, %v1448
      %v1450 = vsel %vm1318, %v1444, 0.0
      %v1451 = vadd.f32 %v1449, %v1450
      %v1452 = vrcp.pop %v1451
      %v1453 = vmul.f32 %v1451, %v1452
      %v1454 = vsub.f32 1.0, %v1453
      %v1455 = vmul.f32 %v1452, %v1454
      %v1456 = vadd.f32 %v1452, %v1455
      %vm1457 = vweird.f32 %v1451
      %vm1458 = vweird.f32 %v1452
      %vm1459 = vmor %vm1457, %vm1458
      %v1460 = vsel %vm1459, %v1452, %v1456
      %v1461 = vand.u32 2147483647, %v1451
      %vm1462 = vcmp.eq.f32.partialorder %v1461, 8.507059e+37
      %v1463 = vand.u32 %v1451, 2147483648
      %v1464 = vor.u32 1.1754944e-38, %v1463
      %v1465 = vsel %vm1462, %v1464, %v1460
      %v1466 = vmul.f32 %v1438, %v1465
      %v1467 = vmul.f32 %v1440, %v1465
      %v1468 = vmul.f32 %v1442, %v1465
      %v1469 = vmul.f32 %v1444, %v1465
      %v1470 = vmax.f32 %v1466, 1e-05
      %v1471 = vmax.f32 %v1467, 1e-05
      %v1472 = vmax.f32 %v1468, 1e-05
      %v1473 = vmax.f32 %v1469, 1e-05
      %v1474 = vsel %vm1318, %v1470, 0.0
      %v1475 = vsel %vm1318, %v1471, 0.0
      %v1476 = vadd.f32 %v1474, %v1475
      %v1477 = vsel %vm1318, %v1472, 0.0
      %v1478 = vadd.f32 %v1476, %v1477
      %v1479 = vsel %vm1318, %v1473, 0.0
      %v1480 = vadd.f32 %v1478, %v1479
      %v1481 = vrcp.pop %v1480
      %v1482 = vmul.f32 %v1480, %v1481
      %v1483 = vsub.f32 1.0, %v1482
      %v1484 = vmul.f32 %v1481, %v1483
      %v1485 = vadd.f32 %v1481, %v1484
      %vm1486 = vweird.f32 %v1480
      %vm1487 = vweird.f32 %v1481
      %vm1488 = vmor %vm1486, %vm1487
      %v1489 = vsel %vm1488, %v1481, %v1485
      %v1490 = vand.u32 2147483647, %v1480
      %vm1491 = vcmp.eq.f32.partialorder %v1490, 8.507059e+37
      %v1492 = vand.u32 %v1480, 2147483648
      %v1493 = vor.u32 1.1754944e-38, %v1492
      %v1494 = vsel %vm1491, %v1493, %v1489
      %v1495 = vmul.f32 %v1470, %v1494
      %v1496 = vmul.f32 %v1471, %v1494
      %v1497 = vmul.f32 %v1472, %v1494
      %v1498 = vmul.f32 %v1473, %v1494
      %v1499 = vlog2.pop %v1414
      %v1500 = vmul.f32 %v1499, 0.6931472
      %v1501 = vlog2.pop %v1415
      %v1502 = vmul.f32 %v1501, 0.6931472
      %v1503 = vlog2.pop %v1416
      %v1504 = vmul.f32 %v1503, 0.6931472
      %v1505 = vlog2.pop %v1417
      %v1506 = vmul.f32 %v1505, 0.6931472
      %v1507 = vlog2.pop %v1495
      %v1508 = vmul.f32 %v1507, 0.6931472
      %v1509 = vlog2.pop %v1496
      %v1510 = vmul.f32 %v1509, 0.6931472
      %v1511 = vlog2.pop %v1497
      %v1512 = vmul.f32 %v1511, 0.6931472
      %v1513 = vlog2.pop %v1498
      %v1514 = vmul.f32 %v1513, 0.6931472
      %v1515 = vsub.f32 %v1500, %v1508
      %v1516 = vsub.f32 %v1502, %v1510
      %v1517 = vsub.f32 %v1504, %v1512
      %v1518 = vsub.f32 %v1506, %v1514
      %v1519 = vmul.f32 %v1414, %v1515
      %v1520 = vmul.f32 %v1415, %v1516
      %v1521 = vmul.f32 %v1416, %v1517
      %v1522 = vmul.f32 %v1417, %v1518
      %v1523 = vsel %vm1318, %v1519, 0.0
      %v1524 = vsel %vm1318, %v1520, 0.0
      %v1525 = vadd.f32 %v1523, %v1524
      %v1526 = vsel %vm1318, %v1521, 0.0
      %v1527 = vadd.f32 %v1525, %v1526
      %v1528 = vsel %vm1318, %v1522, 0.0
      %v1529 = vadd.f32 %v1527, %v1528
      %1530 = vst.msk [vmem:[#allocation13] sm:$0x1] %vm1318, %v1529
    $region65: #{tpu_custom_call.1} parent=1 // pred_fallthru
      _
    // Predicated region
    $region66: #{tpu_custom_call.1} parent=1 // pred_check
      _
    $region67: #{tpu_custom_call.1} parent=1 // pred_check_branch
      %1532 = sbr.rel (0) target = $region69
    $region68: #{tpu_custom_call.1} parent=1 // pred_region
      %1534 = vsyncadd [#allocation6], 0
      %s1536 = sshll.u32 [#allocation12], 4
      %s1537 = int_to_ptr.vmem [resolvable:$true] %s1536
      %s1538 = sshll.u32 %s10, 4
      %s1539 = int_to_ptr.hbm [resolvable:$true] %s1538
      %1541 = dma.vmem_to_hbm [thread:$0]  %s1537, 16, %s1539, [#allocation6]
    $region69: #{tpu_custom_call.1} parent=1 // pred_fallthru
      _
    // Predicated region
    $region70: #{tpu_custom_call.1} parent=1 // pred_check
      _
    $region71: #{tpu_custom_call.1} parent=1 // pred_check_branch
      %1543 = sbr.rel (0) target = $region73
    $region72: #{tpu_custom_call.1} parent=1 // pred_region
      %1545 = vsyncadd [#allocation14], 0
      %s1547 = sshll.u32 [#allocation13], 4
      %s1548 = int_to_ptr.vmem [resolvable:$true] %s1547
      %s1549 = sshll.u32 %s11, 4
      %s1550 = int_to_ptr.hbm [resolvable:$true] %s1549
      %1552 = dma.vmem_to_hbm [thread:$0]  %s1548, 16, %s1550, [#allocation14]
    $region73: #{tpu_custom_call.1} parent=1 // pred_fallthru
      _
    // Predicated region
    $region74: #{tpu_custom_call.1} parent=1 // pred_check
      _
    $region75: #{tpu_custom_call.1} parent=1 // pred_check_branch
      %1554 = sbr.rel (0) target = $region77
    $region76: #{tpu_custom_call.1} parent=1 // pred_region
      %1556 = dma.done [#allocation6], 16
    $region77: #{tpu_custom_call.1} parent=1 // pred_fallthru
      _
    // Predicated region
    $region78: #{tpu_custom_call.1} parent=1 // pred_check
      _
    $region79: #{tpu_custom_call.1} parent=1 // pred_check_branch
      %1558 = sbr.rel (0) target = $region81
    $region80: #{tpu_custom_call.1} parent=1 // pred_region
      %1560 = dma.done [#allocation14], 16
    $region81: #{tpu_custom_call.1} parent=1 // pred_fallthru
      _
    %1561 = vsyncpa [#allocation5], 1
    %1562 = vsyncpa [#allocation8], 1
    %1563 = vsyncpa [#allocation11], 1
    %1564 = vsyncpa [#allocation6], 1
    %1565 = vsyncpa [#allocation14], 1

</llo_original>
